<compile_context>
chip_gen: v5e
topology: v5e:2x2
jax: 0.10.0
libtpu: 0.0.40
codegen_flags: <defaults>
</compile_context>

<pallas_src>
import functools

import jax
import jax.numpy as jnp
from jax.experimental import pallas as pl
from jax.experimental.pallas import tpu as pltpu


def _round_up(x, m):
    return (x + m - 1) // m * m


def gru_encoder_kernel(ids_ref, emb_ref, wih_ref, whh_ref, bih_ref, bhh_ref,
                       out_ref, x_scratch, gi_scratch, *, T, B, Bp, Hp):
    """Single invocation: gather embeddings, hoisted input projection, then the
    sequential GRU recurrence with h carried in registers."""

    # ---- 1) Gather embedding rows for every (t, b) token into x_scratch ----
    # x_scratch layout: (T*Bp, Ep), time-major groups of Bp rows (only the
    # first B rows of each group are real; the rest stay zero).
    x_scratch[...] = jnp.zeros_like(x_scratch)
    for t in range(T):
        for b in range(B):
            tok = ids_ref[t * B + b]                       # scalar read (SMEM)
            row = t * Bp + b                               # static dest row
            x_scratch[pl.ds(row, 1), :] = emb_ref[pl.ds(tok, 1), :]

    # ---- 2) Input projection for ALL timesteps in one MXU matmul ----------
    # gi = X @ W_ih^T + b_ih, shape (T*Bp, 3*Hp); does not depend on h.
    gi_scratch[...] = (
        jnp.dot(x_scratch[...], wih_ref[...], preferred_element_type=jnp.float32)
        + bih_ref[...])

    # ---- 3) Sequential recurrence; h is a single (Bp, Hp) f32 vreg ---------
    def step(t, h_prev):
        start = pl.multiple_of(t * Bp, Bp)                 # sublane-aligned
        gi = gi_scratch[pl.ds(start, Bp), :]               # (Bp, 3*Hp)
        gh = (jnp.dot(h_prev, whh_ref[...],
                      preferred_element_type=jnp.float32)
              + bhh_ref[...])                              # (Bp, 3*Hp)
        # Gate slices are at lane offsets 0 / Hp / 2*Hp (multiples of 128).
        r = jax.nn.sigmoid(gi[:, 0:Hp] + gh[:, 0:Hp])
        z = jax.nn.sigmoid(gi[:, Hp:2 * Hp] + gh[:, Hp:2 * Hp])
        n = jnp.tanh(gi[:, 2 * Hp:3 * Hp] + r * gh[:, 2 * Hp:3 * Hp])
        return (1.0 - z) * n + z * h_prev

    h0 = jnp.zeros((Bp, Hp), jnp.float32)                  # PyTorch default h0
    h_final = jax.lax.fori_loop(0, T, step, h0, unroll=True)
    out_ref[...] = h_final                                 # lane-dense store


def translate_encoder_forward(x_ids, emb, w_ih, w_hh, b_ih, b_hh):
    """Pallas version of TranslateEncoder.forward; returns hs of shape (1, B, H).

    x_ids : (T, B) int token ids (time-major, like PyTorch nn.GRU default).
    emb   : (V, E) embedding table.
    w_ih  : (3H, E), w_hh: (3H, H), b_ih/b_hh: (3H,)  — PyTorch gate order [r,z,n].
    """
    T, B = x_ids.shape
    V, E = emb.shape
    H = w_hh.shape[1]

    Bp = _round_up(B, 8)        # sublane minimum for f32
    Hp = _round_up(H, 128)      # each gate gets its own 128-lane block
    Ep = _round_up(E, 128)
    Vp = _round_up(V, 8)

    f32 = jnp.float32
    emb_p = jnp.zeros((Vp, Ep), f32).at[:V, :E].set(emb.astype(f32))

    # Per-gate padded, transposed weights: gate g lives in lanes [g*Hp, g*Hp+H).
    wih_p = jnp.zeros((Ep, 3 * Hp), f32)
    whh_p = jnp.zeros((Hp, 3 * Hp), f32)
    bih_p = jnp.zeros((1, 3 * Hp), f32)
    bhh_p = jnp.zeros((1, 3 * Hp), f32)
    for g in range(3):
        wih_p = wih_p.at[:E, g * Hp:g * Hp + H].set(
            w_ih[g * H:(g + 1) * H, :].T.astype(f32))
        whh_p = whh_p.at[:H, g * Hp:g * Hp + H].set(
            w_hh[g * H:(g + 1) * H, :].T.astype(f32))
        bih_p = bih_p.at[0, g * Hp:g * Hp + H].set(b_ih[g * H:(g + 1) * H].astype(f32))
        bhh_p = bhh_p.at[0, g * Hp:g * Hp + H].set(b_hh[g * H:(g + 1) * H].astype(f32))

    ids_flat = x_ids.astype(jnp.int32).reshape(T * B)      # scalar-prefetched

    kernel = functools.partial(gru_encoder_kernel, T=T, B=B, Bp=Bp, Hp=Hp)

    h_pad = pl.pallas_call(
        kernel,
        out_shape=jax.ShapeDtypeStruct((Bp, Hp), f32),
        grid_spec=pltpu.PrefetchScalarGridSpec(
            num_scalar_prefetch=1,                         # ids -> SMEM
            grid=(1,),                                     # single grid step
            in_specs=[
                pl.BlockSpec((Vp, Ep), lambda i, ids: (0, 0)),       # emb table
                pl.BlockSpec((Ep, 3 * Hp), lambda i, ids: (0, 0)),   # W_ih^T (padded)
                pl.BlockSpec((Hp, 3 * Hp), lambda i, ids: (0, 0)),   # W_hh^T (padded)
                pl.BlockSpec((1, 3 * Hp), lambda i, ids: (0, 0)),    # b_ih
                pl.BlockSpec((1, 3 * Hp), lambda i, ids: (0, 0)),    # b_hh
            ],
            out_specs=pl.BlockSpec((Bp, Hp), lambda i, ids: (0, 0)),
            scratch_shapes=[
                pltpu.VMEM((T * Bp, Ep), f32),             # gathered embeddings
                pltpu.VMEM((T * Bp, 3 * Hp), f32),         # hoisted gi = X@Wih^T+b
            ],
        ),
        compiler_params=pltpu.CompilerParams(
            dimension_semantics=("arbitrary",)),
    )(ids_flat, emb_p, wih_p, whh_p, bih_p, bhh_p)

    return h_pad[None, :B, :H]                             # (1, B, H)


def ref_forward(x_ids, emb, w_ih, w_hh, b_ih, b_hh):
    """Pure-JAX reference reproducing PyTorch Embedding + nn.GRU semantics."""
    T, B = x_ids.shape
    H = w_hh.shape[1]
    xe = emb[x_ids]                                        # (T, B, E)

    def step(h, x_t):
        gi = x_t @ w_ih.T + b_ih
        gh = h @ w_hh.T + b_hh
        r = jax.nn.sigmoid(gi[:, :H] + gh[:, :H])
        z = jax.nn.sigmoid(gi[:, H:2 * H] + gh[:, H:2 * H])
        n = jnp.tanh(gi[:, 2 * H:] + r * gh[:, 2 * H:])
        h_new = (1.0 - z) * n + z * h
        return h_new, None

    h0 = jnp.zeros((B, H), jnp.float32)
    hT, _ = jax.lax.scan(step, h0, xe)
    return hT[None]                                        # (1, B, H)


if __name__ == "__main__":
    # Small shapes consistent with TranslateEncoder(enc_in, enc_out, h)
    enc_in, enc_out, hidden = 20, 16, 32                   # vocab, emb dim, GRU hidden
    T, B = 8, 2                                            # seq len, batch

    key = jax.random.PRNGKey(0)
    k_ids, k_emb, k_wih, k_whh, k_bih, k_bhh = jax.random.split(key, 6)

    bound = 1.0 / jnp.sqrt(hidden)
    emb = jax.random.normal(k_emb, (enc_in, enc_out), jnp.float32)
    w_ih = jax.random.uniform(k_wih, (3 * hidden, enc_out), jnp.float32, -bound, bound)
    w_hh = jax.random.uniform(k_whh, (3 * hidden, hidden), jnp.float32, -bound, bound)
    b_ih = jax.random.uniform(k_bih, (3 * hidden,), jnp.float32, -bound, bound)
    b_hh = jax.random.uniform(k_bhh, (3 * hidden,), jnp.float32, -bound, bound)

    x_ids = jax.random.randint(k_ids, (T, B), 0, enc_in, jnp.int32)

    hs = translate_encoder_forward(x_ids, emb, w_ih, w_hh, b_ih, b_hh)
    hs = jax.block_until_ready(hs)

    hs_ref = ref_forward(x_ids, emb, w_ih, w_hh, b_ih, b_hh)
    assert hs.shape == (1, B, hidden)
    assert jnp.allclose(hs, hs_ref, rtol=1e-3, atol=1e-3), "mismatch vs pure-JAX reference"

    print("KERNEL_OK")
</pallas_src>

<mosaic_0001>
module attributes {stable_mosaic.version = 11 : i64} {
  func.func @gru_encoder_kernel(%arg0: i32, %arg1: memref<16xi32, #tpu.memory_space<smem>>, %arg2: memref<24x128xf32, #tpu.memory_space<vmem>>, %arg3: memref<128x384xf32, #tpu.memory_space<vmem>>, %arg4: memref<128x384xf32, #tpu.memory_space<vmem>>, %arg5: memref<1x384xf32, #tpu.memory_space<vmem>>, %arg6: memref<1x384xf32, #tpu.memory_space<vmem>>, %arg7: memref<8x128xf32, #tpu.memory_space<vmem>>, %arg8: memref<64x128xf32, #tpu.memory_space<vmem>>, %arg9: memref<64x384xf32, #tpu.memory_space<vmem>>) attributes {dimension_semantics = [#tpu.dimension_semantics<arbitrary>], iteration_bounds = array<i64: 1>, scalar_prefetch = 1 : i64, scratch_operands = 2 : i64, tpu.core_type = #tpu.core_type<tc>, window_params = [{pipeline_mode = #tpu.pipeline_mode<synchronous>, transform_indices = @transform_0, window_bounds = array<i64: 24, 128>}, {pipeline_mode = #tpu.pipeline_mode<synchronous>, transform_indices = @transform_1, window_bounds = array<i64: 128, 384>}, {pipeline_mode = #tpu.pipeline_mode<synchronous>, transform_indices = @transform_2, window_bounds = array<i64: 128, 384>}, {pipeline_mode = #tpu.pipeline_mode<synchronous>, transform_indices = @transform_3, window_bounds = array<i64: 1, 384>}, {pipeline_mode = #tpu.pipeline_mode<synchronous>, transform_indices = @transform_4, window_bounds = array<i64: 1, 384>}, {pipeline_mode = #tpu.pipeline_mode<synchronous>, transform_indices = @transform_5, window_bounds = array<i64: 8, 128>}]} {
    %cst = arith.constant 0.000000e+00 : f32
    %0 = vector.broadcast %cst : f32 to vector<64x128xf32>
    %c0 = arith.constant 0 : index
    %c0_0 = arith.constant 0 : index
    %1 = vector.load %arg8[%c0, %c0_0] : memref<64x128xf32, #tpu.memory_space<vmem>>, vector<64x128xf32>
    tpu.vector_store %arg8[%c0, %c0_0], %0 {strides = array<i32>} : memref<64x128xf32, #tpu.memory_space<vmem>>, vector<64x128xf32>,
    %c0_1 = arith.constant 0 : index
    %2 = memref.load %arg1[%c0_1] : memref<16xi32, #tpu.memory_space<smem>>
    %3 = arith.index_cast %2 : i32 to index
    %c0_2 = arith.constant 0 : index
    %4 = vector.load %arg2[%3, %c0_2] : memref<24x128xf32, #tpu.memory_space<vmem>>, vector<1x128xf32>
    %c0_3 = arith.constant 0 : index
    %c0_4 = arith.constant 0 : index
    %5 = vector.load %arg8[%c0_3, %c0_4] : memref<64x128xf32, #tpu.memory_space<vmem>>, vector<1x128xf32>
    tpu.vector_store %arg8[%c0_3, %c0_4], %4 {strides = array<i32>} : memref<64x128xf32, #tpu.memory_space<vmem>>, vector<1x128xf32>,
    %c1 = arith.constant 1 : index
    %6 = memref.load %arg1[%c1] : memref<16xi32, #tpu.memory_space<smem>>
    %7 = arith.index_cast %6 : i32 to index
    %c0_5 = arith.constant 0 : index
    %8 = vector.load %arg2[%7, %c0_5] : memref<24x128xf32, #tpu.memory_space<vmem>>, vector<1x128xf32>
    %c1_6 = arith.constant 1 : index
    %c0_7 = arith.constant 0 : index
    %9 = vector.load %arg8[%c1_6, %c0_7] : memref<64x128xf32, #tpu.memory_space<vmem>>, vector<1x128xf32>
    tpu.vector_store %arg8[%c1_6, %c0_7], %8 {strides = array<i32>} : memref<64x128xf32, #tpu.memory_space<vmem>>, vector<1x128xf32>,
    %c2 = arith.constant 2 : index
    %10 = memref.load %arg1[%c2] : memref<16xi32, #tpu.memory_space<smem>>
    %11 = arith.index_cast %10 : i32 to index
    %c0_8 = arith.constant 0 : index
    %12 = vector.load %arg2[%11, %c0_8] : memref<24x128xf32, #tpu.memory_space<vmem>>, vector<1x128xf32>
    %c8 = arith.constant 8 : index
    %c0_9 = arith.constant 0 : index
    %13 = vector.load %arg8[%c8, %c0_9] : memref<64x128xf32, #tpu.memory_space<vmem>>, vector<1x128xf32>
    tpu.vector_store %arg8[%c8, %c0_9], %12 {strides = array<i32>} : memref<64x128xf32, #tpu.memory_space<vmem>>, vector<1x128xf32>,
    %c3 = arith.constant 3 : index
    %14 = memref.load %arg1[%c3] : memref<16xi32, #tpu.memory_space<smem>>
    %15 = arith.index_cast %14 : i32 to index
    %c0_10 = arith.constant 0 : index
    %16 = vector.load %arg2[%15, %c0_10] : memref<24x128xf32, #tpu.memory_space<vmem>>, vector<1x128xf32>
    %c9 = arith.constant 9 : index
    %c0_11 = arith.constant 0 : index
    %17 = vector.load %arg8[%c9, %c0_11] : memref<64x128xf32, #tpu.memory_space<vmem>>, vector<1x128xf32>
    tpu.vector_store %arg8[%c9, %c0_11], %16 {strides = array<i32>} : memref<64x128xf32, #tpu.memory_space<vmem>>, vector<1x128xf32>,
    %c4 = arith.constant 4 : index
    %18 = memref.load %arg1[%c4] : memref<16xi32, #tpu.memory_space<smem>>
    %19 = arith.index_cast %18 : i32 to index
    %c0_12 = arith.constant 0 : index
    %20 = vector.load %arg2[%19, %c0_12] : memref<24x128xf32, #tpu.memory_space<vmem>>, vector<1x128xf32>
    %c16 = arith.constant 16 : index
    %c0_13 = arith.constant 0 : index
    %21 = vector.load %arg8[%c16, %c0_13] : memref<64x128xf32, #tpu.memory_space<vmem>>, vector<1x128xf32>
    tpu.vector_store %arg8[%c16, %c0_13], %20 {strides = array<i32>} : memref<64x128xf32, #tpu.memory_space<vmem>>, vector<1x128xf32>,
    %c5 = arith.constant 5 : index
    %22 = memref.load %arg1[%c5] : memref<16xi32, #tpu.memory_space<smem>>
    %23 = arith.index_cast %22 : i32 to index
    %c0_14 = arith.constant 0 : index
    %24 = vector.load %arg2[%23, %c0_14] : memref<24x128xf32, #tpu.memory_space<vmem>>, vector<1x128xf32>
    %c17 = arith.constant 17 : index
    %c0_15 = arith.constant 0 : index
    %25 = vector.load %arg8[%c17, %c0_15] : memref<64x128xf32, #tpu.memory_space<vmem>>, vector<1x128xf32>
    tpu.vector_store %arg8[%c17, %c0_15], %24 {strides = array<i32>} : memref<64x128xf32, #tpu.memory_space<vmem>>, vector<1x128xf32>,
    %c6 = arith.constant 6 : index
    %26 = memref.load %arg1[%c6] : memref<16xi32, #tpu.memory_space<smem>>
    %27 = arith.index_cast %26 : i32 to index
    %c0_16 = arith.constant 0 : index
    %28 = vector.load %arg2[%27, %c0_16] : memref<24x128xf32, #tpu.memory_space<vmem>>, vector<1x128xf32>
    %c24 = arith.constant 24 : index
    %c0_17 = arith.constant 0 : index
    %29 = vector.load %arg8[%c24, %c0_17] : memref<64x128xf32, #tpu.memory_space<vmem>>, vector<1x128xf32>
    tpu.vector_store %arg8[%c24, %c0_17], %28 {strides = array<i32>} : memref<64x128xf32, #tpu.memory_space<vmem>>, vector<1x128xf32>,
    %c7 = arith.constant 7 : index
    %30 = memref.load %arg1[%c7] : memref<16xi32, #tpu.memory_space<smem>>
    %31 = arith.index_cast %30 : i32 to index
    %c0_18 = arith.constant 0 : index
    %32 = vector.load %arg2[%31, %c0_18] : memref<24x128xf32, #tpu.memory_space<vmem>>, vector<1x128xf32>
    %c25 = arith.constant 25 : index
    %c0_19 = arith.constant 0 : index
    %33 = vector.load %arg8[%c25, %c0_19] : memref<64x128xf32, #tpu.memory_space<vmem>>, vector<1x128xf32>
    tpu.vector_store %arg8[%c25, %c0_19], %32 {strides = array<i32>} : memref<64x128xf32, #tpu.memory_space<vmem>>, vector<1x128xf32>,
    %c8_20 = arith.constant 8 : index
    %34 = memref.load %arg1[%c8_20] : memref<16xi32, #tpu.memory_space<smem>>
    %35 = arith.index_cast %34 : i32 to index
    %c0_21 = arith.constant 0 : index
    %36 = vector.load %arg2[%35, %c0_21] : memref<24x128xf32, #tpu.memory_space<vmem>>, vector<1x128xf32>
    %c32 = arith.constant 32 : index
    %c0_22 = arith.constant 0 : index
    %37 = vector.load %arg8[%c32, %c0_22] : memref<64x128xf32, #tpu.memory_space<vmem>>, vector<1x128xf32>
    tpu.vector_store %arg8[%c32, %c0_22], %36 {strides = array<i32>} : memref<64x128xf32, #tpu.memory_space<vmem>>, vector<1x128xf32>,
    %c9_23 = arith.constant 9 : index
    %38 = memref.load %arg1[%c9_23] : memref<16xi32, #tpu.memory_space<smem>>
    %39 = arith.index_cast %38 : i32 to index
    %c0_24 = arith.constant 0 : index
    %40 = vector.load %arg2[%39, %c0_24] : memref<24x128xf32, #tpu.memory_space<vmem>>, vector<1x128xf32>
    %c33 = arith.constant 33 : index
    %c0_25 = arith.constant 0 : index
    %41 = vector.load %arg8[%c33, %c0_25] : memref<64x128xf32, #tpu.memory_space<vmem>>, vector<1x128xf32>
    tpu.vector_store %arg8[%c33, %c0_25], %40 {strides = array<i32>} : memref<64x128xf32, #tpu.memory_space<vmem>>, vector<1x128xf32>,
    %c10 = arith.constant 10 : index
    %42 = memref.load %arg1[%c10] : memref<16xi32, #tpu.memory_space<smem>>
    %43 = arith.index_cast %42 : i32 to index
    %c0_26 = arith.constant 0 : index
    %44 = vector.load %arg2[%43, %c0_26] : memref<24x128xf32, #tpu.memory_space<vmem>>, vector<1x128xf32>
    %c40 = arith.constant 40 : index
    %c0_27 = arith.constant 0 : index
    %45 = vector.load %arg8[%c40, %c0_27] : memref<64x128xf32, #tpu.memory_space<vmem>>, vector<1x128xf32>
    tpu.vector_store %arg8[%c40, %c0_27], %44 {strides = array<i32>} : memref<64x128xf32, #tpu.memory_space<vmem>>, vector<1x128xf32>,
    %c11 = arith.constant 11 : index
    %46 = memref.load %arg1[%c11] : memref<16xi32, #tpu.memory_space<smem>>
    %47 = arith.index_cast %46 : i32 to index
    %c0_28 = arith.constant 0 : index
    %48 = vector.load %arg2[%47, %c0_28] : memref<24x128xf32, #tpu.memory_space<vmem>>, vector<1x128xf32>
    %c41 = arith.constant 41 : index
    %c0_29 = arith.constant 0 : index
    %49 = vector.load %arg8[%c41, %c0_29] : memref<64x128xf32, #tpu.memory_space<vmem>>, vector<1x128xf32>
    tpu.vector_store %arg8[%c41, %c0_29], %48 {strides = array<i32>} : memref<64x128xf32, #tpu.memory_space<vmem>>, vector<1x128xf32>,
    %c12 = arith.constant 12 : index
    %50 = memref.load %arg1[%c12] : memref<16xi32, #tpu.memory_space<smem>>
    %51 = arith.index_cast %50 : i32 to index
    %c0_30 = arith.constant 0 : index
    %52 = vector.load %arg2[%51, %c0_30] : memref<24x128xf32, #tpu.memory_space<vmem>>, vector<1x128xf32>
    %c48 = arith.constant 48 : index
    %c0_31 = arith.constant 0 : index
    %53 = vector.load %arg8[%c48, %c0_31] : memref<64x128xf32, #tpu.memory_space<vmem>>, vector<1x128xf32>
    tpu.vector_store %arg8[%c48, %c0_31], %52 {strides = array<i32>} : memref<64x128xf32, #tpu.memory_space<vmem>>, vector<1x128xf32>,
    %c13 = arith.constant 13 : index
    %54 = memref.load %arg1[%c13] : memref<16xi32, #tpu.memory_space<smem>>
    %55 = arith.index_cast %54 : i32 to index
    %c0_32 = arith.constant 0 : index
    %56 = vector.load %arg2[%55, %c0_32] : memref<24x128xf32, #tpu.memory_space<vmem>>, vector<1x128xf32>
    %c49 = arith.constant 49 : index
    %c0_33 = arith.constant 0 : index
    %57 = vector.load %arg8[%c49, %c0_33] : memref<64x128xf32, #tpu.memory_space<vmem>>, vector<1x128xf32>
    tpu.vector_store %arg8[%c49, %c0_33], %56 {strides = array<i32>} : memref<64x128xf32, #tpu.memory_space<vmem>>, vector<1x128xf32>,
    %c14 = arith.constant 14 : index
    %58 = memref.load %arg1[%c14] : memref<16xi32, #tpu.memory_space<smem>>
    %59 = arith.index_cast %58 : i32 to index
    %c0_34 = arith.constant 0 : index
    %60 = vector.load %arg2[%59, %c0_34] : memref<24x128xf32, #tpu.memory_space<vmem>>, vector<1x128xf32>
    %c56 = arith.constant 56 : index
    %c0_35 = arith.constant 0 : index
    %61 = vector.load %arg8[%c56, %c0_35] : memref<64x128xf32, #tpu.memory_space<vmem>>, vector<1x128xf32>
    tpu.vector_store %arg8[%c56, %c0_35], %60 {strides = array<i32>} : memref<64x128xf32, #tpu.memory_space<vmem>>, vector<1x128xf32>,
    %c15 = arith.constant 15 : index
    %62 = memref.load %arg1[%c15] : memref<16xi32, #tpu.memory_space<smem>>
    %63 = arith.index_cast %62 : i32 to index
    %c0_36 = arith.constant 0 : index
    %64 = vector.load %arg2[%63, %c0_36] : memref<24x128xf32, #tpu.memory_space<vmem>>, vector<1x128xf32>
    %c57 = arith.constant 57 : index
    %c0_37 = arith.constant 0 : index
    %65 = vector.load %arg8[%c57, %c0_37] : memref<64x128xf32, #tpu.memory_space<vmem>>, vector<1x128xf32>
    tpu.vector_store %arg8[%c57, %c0_37], %64 {strides = array<i32>} : memref<64x128xf32, #tpu.memory_space<vmem>>, vector<1x128xf32>,
    %c0_38 = arith.constant 0 : index
    %c0_39 = arith.constant 0 : index
    %66 = vector.load %arg8[%c0_38, %c0_39] : memref<64x128xf32, #tpu.memory_space<vmem>>, vector<64x128xf32>
    %c0_40 = arith.constant 0 : index
    %c0_41 = arith.constant 0 : index
    %67 = vector.load %arg3[%c0_40, %c0_41] : memref<128x384xf32, #tpu.memory_space<vmem>>, vector<128x384xf32>
    %cst_42 = arith.constant dense<0.000000e+00> : vector<64x384xf32>
    %68 = tpu.matmul %66, %67, %cst_42 {dimension_numbers = #tpu.dot_dimension_numbers<[1], [0], [0], [1], [0, 0, 1, 1], [], []>} : vector<64x128xf32>, vector<128x384xf32>, vector<64x384xf32> -> vector<64x384xf32>
    %c0_43 = arith.constant 0 : index
    %c0_44 = arith.constant 0 : index
    %69 = vector.load %arg5[%c0_43, %c0_44] : memref<1x384xf32, #tpu.memory_space<vmem>>, vector<1x384xf32>
    %70 = vector.broadcast %69 : vector<1x384xf32> to vector<64x384xf32>
    %71 = arith.addf %68, %70 : vector<64x384xf32>
    %c0_45 = arith.constant 0 : index
    %c0_46 = arith.constant 0 : index
    %72 = vector.load %arg9[%c0_45, %c0_46] : memref<64x384xf32, #tpu.memory_space<vmem>>, vector<64x384xf32>
    tpu.vector_store %arg9[%c0_45, %c0_46], %71 {strides = array<i32>} : memref<64x384xf32, #tpu.memory_space<vmem>>, vector<64x384xf32>,
    %cst_47 = arith.constant 0.000000e+00 : f32
    %73 = vector.broadcast %cst_47 : f32 to vector<8x128xf32>
    %c0_i32 = arith.constant 0 : i32
    %c8_i32 = arith.constant 8 : i32
    %74 = arith.muli %c0_i32, %c8_i32 : i32
    %75 = tpu.assume_multiple %74, 8 : i32
    %76 = arith.index_cast %75 : i32 to index
    %c0_48 = arith.constant 0 : index
    %77 = vector.load %arg9[%76, %c0_48] : memref<64x384xf32, #tpu.memory_space<vmem>>, vector<8x384xf32>
    %c0_49 = arith.constant 0 : index
    %c0_50 = arith.constant 0 : index
    %78 = vector.load %arg4[%c0_49, %c0_50] : memref<128x384xf32, #tpu.memory_space<vmem>>, vector<128x384xf32>
    %cst_51 = arith.constant dense<0.000000e+00> : vector<8x384xf32>
    %79 = tpu.matmul %73, %78, %cst_51 {dimension_numbers = #tpu.dot_dimension_numbers<[1], [0], [0], [1], [0, 0, 1, 1], [], []>} : vector<8x128xf32>, vector<128x384xf32>, vector<8x384xf32> -> vector<8x384xf32>
    %c0_52 = arith.constant 0 : index
    %c0_53 = arith.constant 0 : index
    %80 = vector.load %arg6[%c0_52, %c0_53] : memref<1x384xf32, #tpu.memory_space<vmem>>, vector<1x384xf32>
    %81 = vector.broadcast %80 : vector<1x384xf32> to vector<8x384xf32>
    %82 = arith.addf %79, %81 : vector<8x384xf32>
    %83 = vector.extract_strided_slice %77 {offsets = [0, 0], sizes = [8, 128], strides = [1, 1]} : vector<8x384xf32> to vector<8x128xf32>
    %84 = vector.extract_strided_slice %82 {offsets = [0, 0], sizes = [8, 128], strides = [1, 1]} : vector<8x384xf32> to vector<8x128xf32>
    %85 = arith.addf %83, %84 : vector<8x128xf32>
    %86 = arith.negf %85 : vector<8x128xf32>
    %87 = math.exp %86 : vector<8x128xf32>
    %cst_54 = arith.constant 1.000000e+00 : f32
    %88 = vector.broadcast %cst_54 : f32 to vector<8x128xf32>
    %89 = arith.addf %88, %87 : vector<8x128xf32>
    %90 = arith.divf %88, %89 : vector<8x128xf32>
    %91 = vector.extract_strided_slice %77 {offsets = [0, 128], sizes = [8, 128], strides = [1, 1]} : vector<8x384xf32> to vector<8x128xf32>
    %92 = vector.extract_strided_slice %82 {offsets = [0, 128], sizes = [8, 128], strides = [1, 1]} : vector<8x384xf32> to vector<8x128xf32>
    %93 = arith.addf %91, %92 : vector<8x128xf32>
    %94 = arith.negf %93 : vector<8x128xf32>
    %95 = math.exp %94 : vector<8x128xf32>
    %cst_55 = arith.constant 1.000000e+00 : f32
    %96 = vector.broadcast %cst_55 : f32 to vector<8x128xf32>
    %97 = arith.addf %96, %95 : vector<8x128xf32>
    %98 = arith.divf %96, %97 : vector<8x128xf32>
    %99 = vector.extract_strided_slice %77 {offsets = [0, 256], sizes = [8, 128], strides = [1, 1]} : vector<8x384xf32> to vector<8x128xf32>
    %100 = vector.extract_strided_slice %82 {offsets = [0, 256], sizes = [8, 128], strides = [1, 1]} : vector<8x384xf32> to vector<8x128xf32>
    %101 = arith.mulf %90, %100 : vector<8x128xf32>
    %102 = arith.addf %99, %101 : vector<8x128xf32>
    %103 = math.tanh %102 : vector<8x128xf32>
    %cst_56 = arith.constant 1.000000e+00 : f32
    %104 = vector.broadcast %cst_56 : f32 to vector<8x128xf32>
    %105 = arith.subf %104, %98 : vector<8x128xf32>
    %106 = arith.mulf %105, %103 : vector<8x128xf32>
    %107 = arith.mulf %98, %73 : vector<8x128xf32>
    %108 = arith.addf %106, %107 : vector<8x128xf32>
    %c1_i32 = arith.constant 1 : i32
    %c8_i32_57 = arith.constant 8 : i32
    %109 = arith.muli %c1_i32, %c8_i32_57 : i32
    %110 = tpu.assume_multiple %109, 8 : i32
    %111 = arith.index_cast %110 : i32 to index
    %c0_58 = arith.constant 0 : index
    %112 = vector.load %arg9[%111, %c0_58] : memref<64x384xf32, #tpu.memory_space<vmem>>, vector<8x384xf32>
    %c0_59 = arith.constant 0 : index
    %c0_60 = arith.constant 0 : index
    %113 = vector.load %arg4[%c0_59, %c0_60] : memref<128x384xf32, #tpu.memory_space<vmem>>, vector<128x384xf32>
    %cst_61 = arith.constant dense<0.000000e+00> : vector<8x384xf32>
    %114 = tpu.matmul %108, %113, %cst_61 {dimension_numbers = #tpu.dot_dimension_numbers<[1], [0], [0], [1], [0, 0, 1, 1], [], []>} : vector<8x128xf32>, vector<128x384xf32>, vector<8x384xf32> -> vector<8x384xf32>
    %c0_62 = arith.constant 0 : index
    %c0_63 = arith.constant 0 : index
    %115 = vector.load %arg6[%c0_62, %c0_63] : memref<1x384xf32, #tpu.memory_space<vmem>>, vector<1x384xf32>
    %116 = vector.broadcast %115 : vector<1x384xf32> to vector<8x384xf32>
    %117 = arith.addf %114, %116 : vector<8x384xf32>
    %118 = vector.extract_strided_slice %112 {offsets = [0, 0], sizes = [8, 128], strides = [1, 1]} : vector<8x384xf32> to vector<8x128xf32>
    %119 = vector.extract_strided_slice %117 {offsets = [0, 0], sizes = [8, 128], strides = [1, 1]} : vector<8x384xf32> to vector<8x128xf32>
    %120 = arith.addf %118, %119 : vector<8x128xf32>
    %121 = arith.negf %120 : vector<8x128xf32>
    %122 = math.exp %121 : vector<8x128xf32>
    %cst_64 = arith.constant 1.000000e+00 : f32
    %123 = vector.broadcast %cst_64 : f32 to vector<8x128xf32>
    %124 = arith.addf %123, %122 : vector<8x128xf32>
    %125 = arith.divf %123, %124 : vector<8x128xf32>
    %126 = vector.extract_strided_slice %112 {offsets = [0, 128], sizes = [8, 128], strides = [1, 1]} : vector<8x384xf32> to vector<8x128xf32>
    %127 = vector.extract_strided_slice %117 {offsets = [0, 128], sizes = [8, 128], strides = [1, 1]} : vector<8x384xf32> to vector<8x128xf32>
    %128 = arith.addf %126, %127 : vector<8x128xf32>
    %129 = arith.negf %128 : vector<8x128xf32>
    %130 = math.exp %129 : vector<8x128xf32>
    %cst_65 = arith.constant 1.000000e+00 : f32
    %131 = vector.broadcast %cst_65 : f32 to vector<8x128xf32>
    %132 = arith.addf %131, %130 : vector<8x128xf32>
    %133 = arith.divf %131, %132 : vector<8x128xf32>
    %134 = vector.extract_strided_slice %112 {offsets = [0, 256], sizes = [8, 128], strides = [1, 1]} : vector<8x384xf32> to vector<8x128xf32>
    %135 = vector.extract_strided_slice %117 {offsets = [0, 256], sizes = [8, 128], strides = [1, 1]} : vector<8x384xf32> to vector<8x128xf32>
    %136 = arith.mulf %125, %135 : vector<8x128xf32>
    %137 = arith.addf %134, %136 : vector<8x128xf32>
    %138 = math.tanh %137 : vector<8x128xf32>
    %cst_66 = arith.constant 1.000000e+00 : f32
    %139 = vector.broadcast %cst_66 : f32 to vector<8x128xf32>
    %140 = arith.subf %139, %133 : vector<8x128xf32>
    %141 = arith.mulf %140, %138 : vector<8x128xf32>
    %142 = arith.mulf %133, %108 : vector<8x128xf32>
    %143 = arith.addf %141, %142 : vector<8x128xf32>
    %c2_i32 = arith.constant 2 : i32
    %c8_i32_67 = arith.constant 8 : i32
    %144 = arith.muli %c2_i32, %c8_i32_67 : i32
    %145 = tpu.assume_multiple %144, 8 : i32
    %146 = arith.index_cast %145 : i32 to index
    %c0_68 = arith.constant 0 : index
    %147 = vector.load %arg9[%146, %c0_68] : memref<64x384xf32, #tpu.memory_space<vmem>>, vector<8x384xf32>
    %c0_69 = arith.constant 0 : index
    %c0_70 = arith.constant 0 : index
    %148 = vector.load %arg4[%c0_69, %c0_70] : memref<128x384xf32, #tpu.memory_space<vmem>>, vector<128x384xf32>
    %cst_71 = arith.constant dense<0.000000e+00> : vector<8x384xf32>
    %149 = tpu.matmul %143, %148, %cst_71 {dimension_numbers = #tpu.dot_dimension_numbers<[1], [0], [0], [1], [0, 0, 1, 1], [], []>} : vector<8x128xf32>, vector<128x384xf32>, vector<8x384xf32> -> vector<8x384xf32>
    %c0_72 = arith.constant 0 : index
    %c0_73 = arith.constant 0 : index
    %150 = vector.load %arg6[%c0_72, %c0_73] : memref<1x384xf32, #tpu.memory_space<vmem>>, vector<1x384xf32>
    %151 = vector.broadcast %150 : vector<1x384xf32> to vector<8x384xf32>
    %152 = arith.addf %149, %151 : vector<8x384xf32>
    %153 = vector.extract_strided_slice %147 {offsets = [0, 0], sizes = [8, 128], strides = [1, 1]} : vector<8x384xf32> to vector<8x128xf32>
    %154 = vector.extract_strided_slice %152 {offsets = [0, 0], sizes = [8, 128], strides = [1, 1]} : vector<8x384xf32> to vector<8x128xf32>
    %155 = arith.addf %153, %154 : vector<8x128xf32>
    %156 = arith.negf %155 : vector<8x128xf32>
    %157 = math.exp %156 : vector<8x128xf32>
    %cst_74 = arith.constant 1.000000e+00 : f32
    %158 = vector.broadcast %cst_74 : f32 to vector<8x128xf32>
    %159 = arith.addf %158, %157 : vector<8x128xf32>
    %160 = arith.divf %158, %159 : vector<8x128xf32>
    %161 = vector.extract_strided_slice %147 {offsets = [0, 128], sizes = [8, 128], strides = [1, 1]} : vector<8x384xf32> to vector<8x128xf32>
    %162 = vector.extract_strided_slice %152 {offsets = [0, 128], sizes = [8, 128], strides = [1, 1]} : vector<8x384xf32> to vector<8x128xf32>
    %163 = arith.addf %161, %162 : vector<8x128xf32>
    %164 = arith.negf %163 : vector<8x128xf32>
    %165 = math.exp %164 : vector<8x128xf32>
    %cst_75 = arith.constant 1.000000e+00 : f32
    %166 = vector.broadcast %cst_75 : f32 to vector<8x128xf32>
    %167 = arith.addf %166, %165 : vector<8x128xf32>
    %168 = arith.divf %166, %167 : vector<8x128xf32>
    %169 = vector.extract_strided_slice %147 {offsets = [0, 256], sizes = [8, 128], strides = [1, 1]} : vector<8x384xf32> to vector<8x128xf32>
    %170 = vector.extract_strided_slice %152 {offsets = [0, 256], sizes = [8, 128], strides = [1, 1]} : vector<8x384xf32> to vector<8x128xf32>
    %171 = arith.mulf %160, %170 : vector<8x128xf32>
    %172 = arith.addf %169, %171 : vector<8x128xf32>
    %173 = math.tanh %172 : vector<8x128xf32>
    %cst_76 = arith.constant 1.000000e+00 : f32
    %174 = vector.broadcast %cst_76 : f32 to vector<8x128xf32>
    %175 = arith.subf %174, %168 : vector<8x128xf32>
    %176 = arith.mulf %175, %173 : vector<8x128xf32>
    %177 = arith.mulf %168, %143 : vector<8x128xf32>
    %178 = arith.addf %176, %177 : vector<8x128xf32>
    %c3_i32 = arith.constant 3 : i32
    %c8_i32_77 = arith.constant 8 : i32
    %179 = arith.muli %c3_i32, %c8_i32_77 : i32
    %180 = tpu.assume_multiple %179, 8 : i32
    %181 = arith.index_cast %180 : i32 to index
    %c0_78 = arith.constant 0 : index
    %182 = vector.load %arg9[%181, %c0_78] : memref<64x384xf32, #tpu.memory_space<vmem>>, vector<8x384xf32>
    %c0_79 = arith.constant 0 : index
    %c0_80 = arith.constant 0 : index
    %183 = vector.load %arg4[%c0_79, %c0_80] : memref<128x384xf32, #tpu.memory_space<vmem>>, vector<128x384xf32>
    %cst_81 = arith.constant dense<0.000000e+00> : vector<8x384xf32>
    %184 = tpu.matmul %178, %183, %cst_81 {dimension_numbers = #tpu.dot_dimension_numbers<[1], [0], [0], [1], [0, 0, 1, 1], [], []>} : vector<8x128xf32>, vector<128x384xf32>, vector<8x384xf32> -> vector<8x384xf32>
    %c0_82 = arith.constant 0 : index
    %c0_83 = arith.constant 0 : index
    %185 = vector.load %arg6[%c0_82, %c0_83] : memref<1x384xf32, #tpu.memory_space<vmem>>, vector<1x384xf32>
    %186 = vector.broadcast %185 : vector<1x384xf32> to vector<8x384xf32>
    %187 = arith.addf %184, %186 : vector<8x384xf32>
    %188 = vector.extract_strided_slice %182 {offsets = [0, 0], sizes = [8, 128], strides = [1, 1]} : vector<8x384xf32> to vector<8x128xf32>
    %189 = vector.extract_strided_slice %187 {offsets = [0, 0], sizes = [8, 128], strides = [1, 1]} : vector<8x384xf32> to vector<8x128xf32>
    %190 = arith.addf %188, %189 : vector<8x128xf32>
    %191 = arith.negf %190 : vector<8x128xf32>
    %192 = math.exp %191 : vector<8x128xf32>
    %cst_84 = arith.constant 1.000000e+00 : f32
    %193 = vector.broadcast %cst_84 : f32 to vector<8x128xf32>
    %194 = arith.addf %193, %192 : vector<8x128xf32>
    %195 = arith.divf %193, %194 : vector<8x128xf32>
    %196 = vector.extract_strided_slice %182 {offsets = [0, 128], sizes = [8, 128], strides = [1, 1]} : vector<8x384xf32> to vector<8x128xf32>
    %197 = vector.extract_strided_slice %187 {offsets = [0, 128], sizes = [8, 128], strides = [1, 1]} : vector<8x384xf32> to vector<8x128xf32>
    %198 = arith.addf %196, %197 : vector<8x128xf32>
    %199 = arith.negf %198 : vector<8x128xf32>
    %200 = math.exp %199 : vector<8x128xf32>
    %cst_85 = arith.constant 1.000000e+00 : f32
    %201 = vector.broadcast %cst_85 : f32 to vector<8x128xf32>
    %202 = arith.addf %201, %200 : vector<8x128xf32>
    %203 = arith.divf %201, %202 : vector<8x128xf32>
    %204 = vector.extract_strided_slice %182 {offsets = [0, 256], sizes = [8, 128], strides = [1, 1]} : vector<8x384xf32> to vector<8x128xf32>
    %205 = vector.extract_strided_slice %187 {offsets = [0, 256], sizes = [8, 128], strides = [1, 1]} : vector<8x384xf32> to vector<8x128xf32>
    %206 = arith.mulf %195, %205 : vector<8x128xf32>
    %207 = arith.addf %204, %206 : vector<8x128xf32>
    %208 = math.tanh %207 : vector<8x128xf32>
    %cst_86 = arith.constant 1.000000e+00 : f32
    %209 = vector.broadcast %cst_86 : f32 to vector<8x128xf32>
    %210 = arith.subf %209, %203 : vector<8x128xf32>
    %211 = arith.mulf %210, %208 : vector<8x128xf32>
    %212 = arith.mulf %203, %178 : vector<8x128xf32>
    %213 = arith.addf %211, %212 : vector<8x128xf32>
    %c4_i32 = arith.constant 4 : i32
    %c8_i32_87 = arith.constant 8 : i32
    %214 = arith.muli %c4_i32, %c8_i32_87 : i32
    %215 = tpu.assume_multiple %214, 8 : i32
    %216 = arith.index_cast %215 : i32 to index
    %c0_88 = arith.constant 0 : index
    %217 = vector.load %arg9[%216, %c0_88] : memref<64x384xf32, #tpu.memory_space<vmem>>, vector<8x384xf32>
    %c0_89 = arith.constant 0 : index
    %c0_90 = arith.constant 0 : index
    %218 = vector.load %arg4[%c0_89, %c0_90] : memref<128x384xf32, #tpu.memory_space<vmem>>, vector<128x384xf32>
    %cst_91 = arith.constant dense<0.000000e+00> : vector<8x384xf32>
    %219 = tpu.matmul %213, %218, %cst_91 {dimension_numbers = #tpu.dot_dimension_numbers<[1], [0], [0], [1], [0, 0, 1, 1], [], []>} : vector<8x128xf32>, vector<128x384xf32>, vector<8x384xf32> -> vector<8x384xf32>
    %c0_92 = arith.constant 0 : index
    %c0_93 = arith.constant 0 : index
    %220 = vector.load %arg6[%c0_92, %c0_93] : memref<1x384xf32, #tpu.memory_space<vmem>>, vector<1x384xf32>
    %221 = vector.broadcast %220 : vector<1x384xf32> to vector<8x384xf32>
    %222 = arith.addf %219, %221 : vector<8x384xf32>
    %223 = vector.extract_strided_slice %217 {offsets = [0, 0], sizes = [8, 128], strides = [1, 1]} : vector<8x384xf32> to vector<8x128xf32>
    %224 = vector.extract_strided_slice %222 {offsets = [0, 0], sizes = [8, 128], strides = [1, 1]} : vector<8x384xf32> to vector<8x128xf32>
    %225 = arith.addf %223, %224 : vector<8x128xf32>
    %226 = arith.negf %225 : vector<8x128xf32>
    %227 = math.exp %226 : vector<8x128xf32>
    %cst_94 = arith.constant 1.000000e+00 : f32
    %228 = vector.broadcast %cst_94 : f32 to vector<8x128xf32>
    %229 = arith.addf %228, %227 : vector<8x128xf32>
    %230 = arith.divf %228, %229 : vector<8x128xf32>
    %231 = vector.extract_strided_slice %217 {offsets = [0, 128], sizes = [8, 128], strides = [1, 1]} : vector<8x384xf32> to vector<8x128xf32>
    %232 = vector.extract_strided_slice %222 {offsets = [0, 128], sizes = [8, 128], strides = [1, 1]} : vector<8x384xf32> to vector<8x128xf32>
    %233 = arith.addf %231, %232 : vector<8x128xf32>
    %234 = arith.negf %233 : vector<8x128xf32>
    %235 = math.exp %234 : vector<8x128xf32>
    %cst_95 = arith.constant 1.000000e+00 : f32
    %236 = vector.broadcast %cst_95 : f32 to vector<8x128xf32>
    %237 = arith.addf %236, %235 : vector<8x128xf32>
    %238 = arith.divf %236, %237 : vector<8x128xf32>
    %239 = vector.extract_strided_slice %217 {offsets = [0, 256], sizes = [8, 128], strides = [1, 1]} : vector<8x384xf32> to vector<8x128xf32>
    %240 = vector.extract_strided_slice %222 {offsets = [0, 256], sizes = [8, 128], strides = [1, 1]} : vector<8x384xf32> to vector<8x128xf32>
    %241 = arith.mulf %230, %240 : vector<8x128xf32>
    %242 = arith.addf %239, %241 : vector<8x128xf32>
    %243 = math.tanh %242 : vector<8x128xf32>
    %cst_96 = arith.constant 1.000000e+00 : f32
    %244 = vector.broadcast %cst_96 : f32 to vector<8x128xf32>
    %245 = arith.subf %244, %238 : vector<8x128xf32>
    %246 = arith.mulf %245, %243 : vector<8x128xf32>
    %247 = arith.mulf %238, %213 : vector<8x128xf32>
    %248 = arith.addf %246, %247 : vector<8x128xf32>
    %c5_i32 = arith.constant 5 : i32
    %c8_i32_97 = arith.constant 8 : i32
    %249 = arith.muli %c5_i32, %c8_i32_97 : i32
    %250 = tpu.assume_multiple %249, 8 : i32
    %251 = arith.index_cast %250 : i32 to index
    %c0_98 = arith.constant 0 : index
    %252 = vector.load %arg9[%251, %c0_98] : memref<64x384xf32, #tpu.memory_space<vmem>>, vector<8x384xf32>
    %c0_99 = arith.constant 0 : index
    %c0_100 = arith.constant 0 : index
    %253 = vector.load %arg4[%c0_99, %c0_100] : memref<128x384xf32, #tpu.memory_space<vmem>>, vector<128x384xf32>
    %cst_101 = arith.constant dense<0.000000e+00> : vector<8x384xf32>
    %254 = tpu.matmul %248, %253, %cst_101 {dimension_numbers = #tpu.dot_dimension_numbers<[1], [0], [0], [1], [0, 0, 1, 1], [], []>} : vector<8x128xf32>, vector<128x384xf32>, vector<8x384xf32> -> vector<8x384xf32>
    %c0_102 = arith.constant 0 : index
    %c0_103 = arith.constant 0 : index
    %255 = vector.load %arg6[%c0_102, %c0_103] : memref<1x384xf32, #tpu.memory_space<vmem>>, vector<1x384xf32>
    %256 = vector.broadcast %255 : vector<1x384xf32> to vector<8x384xf32>
    %257 = arith.addf %254, %256 : vector<8x384xf32>
    %258 = vector.extract_strided_slice %252 {offsets = [0, 0], sizes = [8, 128], strides = [1, 1]} : vector<8x384xf32> to vector<8x128xf32>
    %259 = vector.extract_strided_slice %257 {offsets = [0, 0], sizes = [8, 128], strides = [1, 1]} : vector<8x384xf32> to vector<8x128xf32>
    %260 = arith.addf %258, %259 : vector<8x128xf32>
    %261 = arith.negf %260 : vector<8x128xf32>
    %262 = math.exp %261 : vector<8x128xf32>
    %cst_104 = arith.constant 1.000000e+00 : f32
    %263 = vector.broadcast %cst_104 : f32 to vector<8x128xf32>
    %264 = arith.addf %263, %262 : vector<8x128xf32>
    %265 = arith.divf %263, %264 : vector<8x128xf32>
    %266 = vector.extract_strided_slice %252 {offsets = [0, 128], sizes = [8, 128], strides = [1, 1]} : vector<8x384xf32> to vector<8x128xf32>
    %267 = vector.extract_strided_slice %257 {offsets = [0, 128], sizes = [8, 128], strides = [1, 1]} : vector<8x384xf32> to vector<8x128xf32>
    %268 = arith.addf %266, %267 : vector<8x128xf32>
    %269 = arith.negf %268 : vector<8x128xf32>
    %270 = math.exp %269 : vector<8x128xf32>
    %cst_105 = arith.constant 1.000000e+00 : f32
    %271 = vector.broadcast %cst_105 : f32 to vector<8x128xf32>
    %272 = arith.addf %271, %270 : vector<8x128xf32>
    %273 = arith.divf %271, %272 : vector<8x128xf32>
    %274 = vector.extract_strided_slice %252 {offsets = [0, 256], sizes = [8, 128], strides = [1, 1]} : vector<8x384xf32> to vector<8x128xf32>
    %275 = vector.extract_strided_slice %257 {offsets = [0, 256], sizes = [8, 128], strides = [1, 1]} : vector<8x384xf32> to vector<8x128xf32>
    %276 = arith.mulf %265, %275 : vector<8x128xf32>
    %277 = arith.addf %274, %276 : vector<8x128xf32>
    %278 = math.tanh %277 : vector<8x128xf32>
    %cst_106 = arith.constant 1.000000e+00 : f32
    %279 = vector.broadcast %cst_106 : f32 to vector<8x128xf32>
    %280 = arith.subf %279, %273 : vector<8x128xf32>
    %281 = arith.mulf %280, %278 : vector<8x128xf32>
    %282 = arith.mulf %273, %248 : vector<8x128xf32>
    %283 = arith.addf %281, %282 : vector<8x128xf32>
    %c6_i32 = arith.constant 6 : i32
    %c8_i32_107 = arith.constant 8 : i32
    %284 = arith.muli %c6_i32, %c8_i32_107 : i32
    %285 = tpu.assume_multiple %284, 8 : i32
    %286 = arith.index_cast %285 : i32 to index
    %c0_108 = arith.constant 0 : index
    %287 = vector.load %arg9[%286, %c0_108] : memref<64x384xf32, #tpu.memory_space<vmem>>, vector<8x384xf32>
    %c0_109 = arith.constant 0 : index
    %c0_110 = arith.constant 0 : index
    %288 = vector.load %arg4[%c0_109, %c0_110] : memref<128x384xf32, #tpu.memory_space<vmem>>, vector<128x384xf32>
    %cst_111 = arith.constant dense<0.000000e+00> : vector<8x384xf32>
    %289 = tpu.matmul %283, %288, %cst_111 {dimension_numbers = #tpu.dot_dimension_numbers<[1], [0], [0], [1], [0, 0, 1, 1], [], []>} : vector<8x128xf32>, vector<128x384xf32>, vector<8x384xf32> -> vector<8x384xf32>
    %c0_112 = arith.constant 0 : index
    %c0_113 = arith.constant 0 : index
    %290 = vector.load %arg6[%c0_112, %c0_113] : memref<1x384xf32, #tpu.memory_space<vmem>>, vector<1x384xf32>
    %291 = vector.broadcast %290 : vector<1x384xf32> to vector<8x384xf32>
    %292 = arith.addf %289, %291 : vector<8x384xf32>
    %293 = vector.extract_strided_slice %287 {offsets = [0, 0], sizes = [8, 128], strides = [1, 1]} : vector<8x384xf32> to vector<8x128xf32>
    %294 = vector.extract_strided_slice %292 {offsets = [0, 0], sizes = [8, 128], strides = [1, 1]} : vector<8x384xf32> to vector<8x128xf32>
    %295 = arith.addf %293, %294 : vector<8x128xf32>
    %296 = arith.negf %295 : vector<8x128xf32>
    %297 = math.exp %296 : vector<8x128xf32>
    %cst_114 = arith.constant 1.000000e+00 : f32
    %298 = vector.broadcast %cst_114 : f32 to vector<8x128xf32>
    %299 = arith.addf %298, %297 : vector<8x128xf32>
    %300 = arith.divf %298, %299 : vector<8x128xf32>
    %301 = vector.extract_strided_slice %287 {offsets = [0, 128], sizes = [8, 128], strides = [1, 1]} : vector<8x384xf32> to vector<8x128xf32>
    %302 = vector.extract_strided_slice %292 {offsets = [0, 128], sizes = [8, 128], strides = [1, 1]} : vector<8x384xf32> to vector<8x128xf32>
    %303 = arith.addf %301, %302 : vector<8x128xf32>
    %304 = arith.negf %303 : vector<8x128xf32>
    %305 = math.exp %304 : vector<8x128xf32>
    %cst_115 = arith.constant 1.000000e+00 : f32
    %306 = vector.broadcast %cst_115 : f32 to vector<8x128xf32>
    %307 = arith.addf %306, %305 : vector<8x128xf32>
    %308 = arith.divf %306, %307 : vector<8x128xf32>
    %309 = vector.extract_strided_slice %287 {offsets = [0, 256], sizes = [8, 128], strides = [1, 1]} : vector<8x384xf32> to vector<8x128xf32>
    %310 = vector.extract_strided_slice %292 {offsets = [0, 256], sizes = [8, 128], strides = [1, 1]} : vector<8x384xf32> to vector<8x128xf32>
    %311 = arith.mulf %300, %310 : vector<8x128xf32>
    %312 = arith.addf %309, %311 : vector<8x128xf32>
    %313 = math.tanh %312 : vector<8x128xf32>
    %cst_116 = arith.constant 1.000000e+00 : f32
    %314 = vector.broadcast %cst_116 : f32 to vector<8x128xf32>
    %315 = arith.subf %314, %308 : vector<8x128xf32>
    %316 = arith.mulf %315, %313 : vector<8x128xf32>
    %317 = arith.mulf %308, %283 : vector<8x128xf32>
    %318 = arith.addf %316, %317 : vector<8x128xf32>
    %c7_i32 = arith.constant 7 : i32
    %c8_i32_117 = arith.constant 8 : i32
    %319 = arith.muli %c7_i32, %c8_i32_117 : i32
    %320 = tpu.assume_multiple %319, 8 : i32
    %321 = arith.index_cast %320 : i32 to index
    %c0_118 = arith.constant 0 : index
    %322 = vector.load %arg9[%321, %c0_118] : memref<64x384xf32, #tpu.memory_space<vmem>>, vector<8x384xf32>
    %c0_119 = arith.constant 0 : index
    %c0_120 = arith.constant 0 : index
    %323 = vector.load %arg4[%c0_119, %c0_120] : memref<128x384xf32, #tpu.memory_space<vmem>>, vector<128x384xf32>
    %cst_121 = arith.constant dense<0.000000e+00> : vector<8x384xf32>
    %324 = tpu.matmul %318, %323, %cst_121 {dimension_numbers = #tpu.dot_dimension_numbers<[1], [0], [0], [1], [0, 0, 1, 1], [], []>} : vector<8x128xf32>, vector<128x384xf32>, vector<8x384xf32> -> vector<8x384xf32>
    %c0_122 = arith.constant 0 : index
    %c0_123 = arith.constant 0 : index
    %325 = vector.load %arg6[%c0_122, %c0_123] : memref<1x384xf32, #tpu.memory_space<vmem>>, vector<1x384xf32>
    %326 = vector.broadcast %325 : vector<1x384xf32> to vector<8x384xf32>
    %327 = arith.addf %324, %326 : vector<8x384xf32>
    %328 = vector.extract_strided_slice %322 {offsets = [0, 0], sizes = [8, 128], strides = [1, 1]} : vector<8x384xf32> to vector<8x128xf32>
    %329 = vector.extract_strided_slice %327 {offsets = [0, 0], sizes = [8, 128], strides = [1, 1]} : vector<8x384xf32> to vector<8x128xf32>
    %330 = arith.addf %328, %329 : vector<8x128xf32>
    %331 = arith.negf %330 : vector<8x128xf32>
    %332 = math.exp %331 : vector<8x128xf32>
    %cst_124 = arith.constant 1.000000e+00 : f32
    %333 = vector.broadcast %cst_124 : f32 to vector<8x128xf32>
    %334 = arith.addf %333, %332 : vector<8x128xf32>
    %335 = arith.divf %333, %334 : vector<8x128xf32>
    %336 = vector.extract_strided_slice %322 {offsets = [0, 128], sizes = [8, 128], strides = [1, 1]} : vector<8x384xf32> to vector<8x128xf32>
    %337 = vector.extract_strided_slice %327 {offsets = [0, 128], sizes = [8, 128], strides = [1, 1]} : vector<8x384xf32> to vector<8x128xf32>
    %338 = arith.addf %336, %337 : vector<8x128xf32>
    %339 = arith.negf %338 : vector<8x128xf32>
    %340 = math.exp %339 : vector<8x128xf32>
    %cst_125 = arith.constant 1.000000e+00 : f32
    %341 = vector.broadcast %cst_125 : f32 to vector<8x128xf32>
    %342 = arith.addf %341, %340 : vector<8x128xf32>
    %343 = arith.divf %341, %342 : vector<8x128xf32>
    %344 = vector.extract_strided_slice %322 {offsets = [0, 256], sizes = [8, 128], strides = [1, 1]} : vector<8x384xf32> to vector<8x128xf32>
    %345 = vector.extract_strided_slice %327 {offsets = [0, 256], sizes = [8, 128], strides = [1, 1]} : vector<8x384xf32> to vector<8x128xf32>
    %346 = arith.mulf %335, %345 : vector<8x128xf32>
    %347 = arith.addf %344, %346 : vector<8x128xf32>
    %348 = math.tanh %347 : vector<8x128xf32>
    %cst_126 = arith.constant 1.000000e+00 : f32
    %349 = vector.broadcast %cst_126 : f32 to vector<8x128xf32>
    %350 = arith.subf %349, %343 : vector<8x128xf32>
    %351 = arith.mulf %350, %348 : vector<8x128xf32>
    %352 = arith.mulf %343, %318 : vector<8x128xf32>
    %353 = arith.addf %351, %352 : vector<8x128xf32>
    %c8_i32_127 = arith.constant 8 : i32
    %c0_128 = arith.constant 0 : index
    %c0_129 = arith.constant 0 : index
    %354 = vector.load %arg7[%c0_128, %c0_129] : memref<8x128xf32, #tpu.memory_space<vmem>>, vector<8x128xf32>
    tpu.vector_store %arg7[%c0_128, %c0_129], %353 {strides = array<i32>} : memref<8x128xf32, #tpu.memory_space<vmem>>, vector<8x128xf32>,
    return
  }
  func.func @transform_0(%arg0: i32, %arg1: memref<16xi32, #tpu.memory_space<smem>>) -> (i32, i32) {
    %c0_i32 = arith.constant 0 : i32
    %c0_i32_0 = arith.constant 0 : i32
    %c0_i32_1 = arith.constant 0 : i32
    return %c0_i32, %c0_i32_0 : i32, i32
  }
  func.func @transform_1(%arg0: i32, %arg1: memref<16xi32, #tpu.memory_space<smem>>) -> (i32, i32) {
    %c0_i32 = arith.constant 0 : i32
    %c0_i32_0 = arith.constant 0 : i32
    %c0_i32_1 = arith.constant 0 : i32
    return %c0_i32, %c0_i32_0 : i32, i32
  }
  func.func @transform_2(%arg0: i32, %arg1: memref<16xi32, #tpu.memory_space<smem>>) -> (i32, i32) {
    %c0_i32 = arith.constant 0 : i32
    %c0_i32_0 = arith.constant 0 : i32
    %c0_i32_1 = arith.constant 0 : i32
    return %c0_i32, %c0_i32_0 : i32, i32
  }
  func.func @transform_3(%arg0: i32, %arg1: memref<16xi32, #tpu.memory_space<smem>>) -> (i32, i32) {
    %c0_i32 = arith.constant 0 : i32
    %c0_i32_0 = arith.constant 0 : i32
    %c0_i32_1 = arith.constant 0 : i32
    return %c0_i32, %c0_i32_0 : i32, i32
  }
  func.func @transform_4(%arg0: i32, %arg1: memref<16xi32, #tpu.memory_space<smem>>) -> (i32, i32) {
    %c0_i32 = arith.constant 0 : i32
    %c0_i32_0 = arith.constant 0 : i32
    %c0_i32_1 = arith.constant 0 : i32
    return %c0_i32, %c0_i32_0 : i32, i32
  }
  func.func @transform_5(%arg0: i32, %arg1: memref<16xi32, #tpu.memory_space<smem>>) -> (i32, i32) {
    %c0_i32 = arith.constant 0 : i32
    %c0_i32_0 = arith.constant 0 : i32
    %c0_i32_1 = arith.constant 0 : i32
    return %c0_i32, %c0_i32_0 : i32, i32
  }
}

</mosaic_0001>

<llo_original>
// kernel: tpu_custom_call.1
$region0: #{tpu_custom_call.1}
  #allocation0 [shape = 'u32[]', space=smem, size = 0x4, offset = 0x4, fixed_abs, tag = 'smem constant byte address 0x4 - core index']
  #allocation1 [shape = 'u32[72,128]{1,0:T(1,128)}', space=vmem, size = 0x9000, scoped, tag = 'internal scratch']
  #allocation2 [shape = 'f32[64,128]{1,0:T(8,128)}', space=vmem, size = 0x8000, scoped, tag = 'scratch operand']
  #allocation3 [shape = 'f32[64,384]{1,0:T(8,128)}', space=vmem, size = 0x18000, scoped, tag = 'scratch operand']
  #allocation4 [shape = 's32[1]{0}', space=sflag, size = 0x4, scoped, tag = 'scoped memory for tpu_custom_call.1']
  #allocation5 [shape = 'u8[512]{0}', space=smem, size = 0x200, scoped, tag = 'prefetched SMEM operand 0']
  %s0 = inlined_call_operand.hbm [shape: s32[16], index: 0, kind: input, shape index: {}]
  %s1 = inlined_call_operand.hbm [shape: f32[24,128], index: 1, kind: input, shape index: {}]
  %s2 = inlined_call_operand.hbm [shape: f32[128,384], index: 2, kind: input, shape index: {}]
  %s3 = inlined_call_operand.hbm [shape: f32[128,384], index: 3, kind: input, shape index: {}]
  %s4 = inlined_call_operand.vmem [shape: f32[1,384], index: 4, kind: input, shape index: {}]
  %s5 = inlined_call_operand.hbm [shape: f32[1,384], index: 5, kind: input, shape index: {}]
  %s6 = inlined_call_operand.hbm [shape: f32[8,128], index: 6, kind: output, shape index: {}]
  %s7 = sld [smem:[#allocation0]]
  $region46: #{tpu_custom_call.1} parent=0
    _
  %s9 = ssub.s32 1, %s7
  %s10 = scalar_select 0, %s9, %s7
  %s12 = sshll.u32 %s0, 4
  %s13 = int_to_ptr.hbm [resolvable:$true] %s12
  %15 = dma.hbm_to_smem %s13, 16, [#allocation5], [#allocation4]
  %17 = dma.done [#allocation4], 16
  %18 = sfence
  $region1: #{tpu_custom_call.1} parent=0
    #allocation6 [shape = 'u8[12288]{0}', space=vmem, size = 0x3000, scoped, tag = 'input window, operand 1, single buffered']
    #allocation7 [shape = 's32[1]{0}', space=sflag, size = 0x4, scoped, tag = 'scoped memory for tpu_custom_call.1']
    #allocation8 [shape = 's32[1]{0}', space=sflag, size = 0x4, scoped, tag = 'scoped memory for tpu_custom_call.1']
    #allocation9 [shape = 'u8[196608]{0}', space=vmem, size = 0x30000, scoped, tag = 'input window, operand 2, single buffered']
    #allocation10 [shape = 's32[1]{0}', space=sflag, size = 0x4, scoped, tag = 'scoped memory for tpu_custom_call.1']
    #allocation11 [shape = 'u8[196608]{0}', space=vmem, size = 0x30000, scoped, tag = 'input window, operand 3, single buffered']
    #allocation12 [shape = 'u8[1536]{0}', space=vmem, size = 0x800, scoped, tag = 'input window, operand 5, single buffered']
    #allocation13 [shape = 's32[1]{0}', space=sflag, size = 0x4, scoped, tag = 'scoped memory for tpu_custom_call.1']
    #allocation14 [shape = 'u8[4096]{0}', space=vmem, size = 0x1000, scoped, tag = 'output window, operand 0, single buffered']
    %19 = vsyncpa [#allocation7], 0
    %20 = vsyncpa [#allocation10], 0
    %21 = vsyncpa [#allocation13], 0
    %22 = vsyncpa [#allocation8], 0
    // Predicated region
    $region2: #{tpu_custom_call.1} parent=1 // pred_check
      _
    $region3: #{tpu_custom_call.1} parent=1 // pred_check_branch
      %24 = sbr.rel (0) target = $region5
    $region4: #{tpu_custom_call.1} parent=1 // pred_region
      %26 = vsyncadd [#allocation7], 0
      %s27 = sshll.u32 %s1, 4
      %s28 = int_to_ptr.hbm [resolvable:$true] %s27
      %s29 = sshll.u32 [#allocation6], 4
      %s30 = int_to_ptr.vmem [resolvable:$true] %s29
      %35 = dma.hbm_to_vmem [thread:$0]  %s28, 384, %s30, [#allocation7], 128, 128, 8
    $region5: #{tpu_custom_call.1} parent=1 // pred_fallthru
      _
    // Predicated region
    $region6: #{tpu_custom_call.1} parent=1 // pred_check
      _
    $region7: #{tpu_custom_call.1} parent=1 // pred_check_branch
      %37 = sbr.rel (0) target = $region9
    $region8: #{tpu_custom_call.1} parent=1 // pred_region
      %39 = vsyncadd [#allocation10], 0
      %s40 = sshll.u32 %s2, 4
      %s41 = int_to_ptr.hbm [resolvable:$true] %s40
      %s42 = sshll.u32 [#allocation9], 4
      %s43 = int_to_ptr.vmem [resolvable:$true] %s42
      %48 = dma.hbm_to_vmem [thread:$0]  %s41, 6144, %s43, [#allocation10], 384, 384, 24
    $region9: #{tpu_custom_call.1} parent=1 // pred_fallthru
      _
    // Predicated region
    $region10: #{tpu_custom_call.1} parent=1 // pred_check
      _
    $region11: #{tpu_custom_call.1} parent=1 // pred_check_branch
      %50 = sbr.rel (0) target = $region13
    $region12: #{tpu_custom_call.1} parent=1 // pred_region
      %52 = vsyncadd [#allocation10], 0
      %s53 = sshll.u32 %s3, 4
      %s54 = int_to_ptr.hbm [resolvable:$true] %s53
      %s55 = sshll.u32 [#allocation11], 4
      %s56 = int_to_ptr.vmem [resolvable:$true] %s55
      %61 = dma.hbm_to_vmem [thread:$0]  %s54, 6144, %s56, [#allocation10], 384, 384, 24
    $region13: #{tpu_custom_call.1} parent=1 // pred_fallthru
      _
    // Predicated region
    $region14: #{tpu_custom_call.1} parent=1 // pred_check
      _
    $region15: #{tpu_custom_call.1} parent=1 // pred_check_branch
      %63 = sbr.rel (0) target = $region17
    $region16: #{tpu_custom_call.1} parent=1 // pred_region
      _
    $region17: #{tpu_custom_call.1} parent=1 // pred_fallthru
      _
    // Predicated region
    $region18: #{tpu_custom_call.1} parent=1 // pred_check
      _
    $region19: #{tpu_custom_call.1} parent=1 // pred_check_branch
      %65 = sbr.rel (0) target = $region21
    $region20: #{tpu_custom_call.1} parent=1 // pred_region
      %67 = vsyncadd [#allocation13], 0
      %s69 = sshll.u32 %s5, 4
      %s70 = int_to_ptr.hbm [resolvable:$true] %s69
      %s71 = sshll.u32 [#allocation12], 4
      %s72 = int_to_ptr.vmem [resolvable:$true] %s71
      %74 = dma.hbm_to_vmem [thread:$0]  %s70, 48, %s72, [#allocation13]
    $region21: #{tpu_custom_call.1} parent=1 // pred_fallthru
      _
    // Predicated region
    $region22: #{tpu_custom_call.1} parent=1 // pred_check
      _
    $region23: #{tpu_custom_call.1} parent=1 // pred_check_branch
      %76 = sbr.rel (0) target = $region25
    $region24: #{tpu_custom_call.1} parent=1 // pred_region
      %78 = dma.done [#allocation7], 384
    $region25: #{tpu_custom_call.1} parent=1 // pred_fallthru
      _
    // Predicated region
    $region26: #{tpu_custom_call.1} parent=1 // pred_check
      _
    $region27: #{tpu_custom_call.1} parent=1 // pred_check_branch
      %80 = sbr.rel (0) target = $region29
    $region28: #{tpu_custom_call.1} parent=1 // pred_region
      %82 = dma.done [#allocation10], 6144
    $region29: #{tpu_custom_call.1} parent=1 // pred_fallthru
      _
    // Predicated region
    $region30: #{tpu_custom_call.1} parent=1 // pred_check
      _
    $region31: #{tpu_custom_call.1} parent=1 // pred_check_branch
      %84 = sbr.rel (0) target = $region33
    $region32: #{tpu_custom_call.1} parent=1 // pred_region
      %86 = dma.done [#allocation10], 6144
    $region33: #{tpu_custom_call.1} parent=1 // pred_fallthru
      _
    // Predicated region
    $region34: #{tpu_custom_call.1} parent=1 // pred_check
      _
    $region35: #{tpu_custom_call.1} parent=1 // pred_check_branch
      %88 = sbr.rel (0) target = $region37
    $region36: #{tpu_custom_call.1} parent=1 // pred_region
      %90 = dma.done [#allocation13], 48
    $region37: #{tpu_custom_call.1} parent=1 // pred_fallthru
      _
    %91 = vst [vmem:[#allocation2] sm:$0xff] 0.0
    %92 = vst [vmem:[#allocation2 + $0x8] sm:$0xff] 0.0
    %93 = vst [vmem:[#allocation2 + $0x10] sm:$0xff] 0.0
    %94 = vst [vmem:[#allocation2 + $0x18] sm:$0xff] 0.0
    %95 = vst [vmem:[#allocation2 + $0x20] sm:$0xff] 0.0
    %96 = vst [vmem:[#allocation2 + $0x28] sm:$0xff] 0.0
    %97 = vst [vmem:[#allocation2 + $0x30] sm:$0xff] 0.0
    %98 = vst [vmem:[#allocation2 + $0x38] sm:$0xff] 0.0
    %s99 = sld [smem:[#allocation5]]
    %s100 = scalar_lea.vmem [#allocation6], %s99
    %v101 = vld [vmem:[%s100] sm:$0x1]
    %102 = vst [vmem:[#allocation2] sm:$0x1] %v101
    %s103 = sld [smem:[#allocation5 + $0x1]]
    %s104 = scalar_lea.vmem [#allocation6], %s103
    %v105 = vld [vmem:[%s104] sm:$0x1]
    %106 = vst [vmem:[#allocation2 + $0x1] sm:$0x1] %v105
    %s107 = sld [smem:[#allocation5 + $0x2]]
    %s108 = scalar_lea.vmem [#allocation6], %s107
    %v109 = vld [vmem:[%s108] sm:$0x1]
    %110 = vst [vmem:[#allocation2 + $0x8] sm:$0x1] %v109
    %s111 = sld [smem:[#allocation5 + $0x3]]
    %s112 = scalar_lea.vmem [#allocation6], %s111
    %v113 = vld [vmem:[%s112] sm:$0x1]
    %114 = vst [vmem:[#allocation2 + $0x9] sm:$0x1] %v113
    %s115 = sld [smem:[#allocation5 + $0x4]]
    %s116 = scalar_lea.vmem [#allocation6], %s115
    %v117 = vld [vmem:[%s116] sm:$0x1]
    %118 = vst [vmem:[#allocation2 + $0x10] sm:$0x1] %v117
    %s119 = sld [smem:[#allocation5 + $0x5]]
    %s120 = scalar_lea.vmem [#allocation6], %s119
    %v121 = vld [vmem:[%s120] sm:$0x1]
    %122 = vst [vmem:[#allocation2 + $0x11] sm:$0x1] %v121
    %s123 = sld [smem:[#allocation5 + $0x6]]
    %s124 = scalar_lea.vmem [#allocation6], %s123
    %v125 = vld [vmem:[%s124] sm:$0x1]
    %126 = vst [vmem:[#allocation2 + $0x18] sm:$0x1] %v125
    %s127 = sld [smem:[#allocation5 + $0x7]]
    %s128 = scalar_lea.vmem [#allocation6], %s127
    %v129 = vld [vmem:[%s128] sm:$0x1]
    %130 = vst [vmem:[#allocation2 + $0x19] sm:$0x1] %v129
    %s131 = sld [smem:[#allocation5 + $0x8]]
    %s132 = scalar_lea.vmem [#allocation6], %s131
    %v133 = vld [vmem:[%s132] sm:$0x1]
    %134 = vst [vmem:[#allocation2 + $0x20] sm:$0x1] %v133
    %s135 = sld [smem:[#allocation5 + $0x9]]
    %s136 = scalar_lea.vmem [#allocation6], %s135
    %v137 = vld [vmem:[%s136] sm:$0x1]
    %138 = vst [vmem:[#allocation2 + $0x21] sm:$0x1] %v137
    %s139 = sld [smem:[#allocation5 + $0xa]]
    %s140 = scalar_lea.vmem [#allocation6], %s139
    %v141 = vld [vmem:[%s140] sm:$0x1]
    %142 = vst [vmem:[#allocation2 + $0x28] sm:$0x1] %v141
    %s143 = sld [smem:[#allocation5 + $0xb]]
    %s144 = scalar_lea.vmem [#allocation6], %s143
    %v145 = vld [vmem:[%s144] sm:$0x1]
    %146 = vst [vmem:[#allocation2 + $0x29] sm:$0x1] %v145
    %s147 = sld [smem:[#allocation5 + $0xc]]
    %s148 = scalar_lea.vmem [#allocation6], %s147
    %v149 = vld [vmem:[%s148] sm:$0x1]
    %150 = vst [vmem:[#allocation2 + $0x30] sm:$0x1] %v149
    %s151 = sld [smem:[#allocation5 + $0xd]]
    %s152 = scalar_lea.vmem [#allocation6], %s151
    %v153 = vld [vmem:[%s152] sm:$0x1]
    %154 = vst [vmem:[#allocation2 + $0x31] sm:$0x1] %v153
    %s155 = sld [smem:[#allocation5 + $0xe]]
    %s156 = scalar_lea.vmem [#allocation6], %s155
    %v157 = vld [vmem:[%s156] sm:$0x1]
    %158 = vst [vmem:[#allocation2 + $0x38] sm:$0x1] %v157
    %s159 = sld [smem:[#allocation5 + $0xf]]
    %s160 = scalar_lea.vmem [#allocation6], %s159
    %v161 = vld [vmem:[%s160] sm:$0x1]
    %162 = vst [vmem:[#allocation2 + $0x39] sm:$0x1] %v161
    %v163 = vld [vmem:[#allocation2] sm:$0xff]
    %v164 = vld [vmem:[#allocation2 + $0x8] sm:$0xff]
    %v165 = vld [vmem:[#allocation2 + $0x10] sm:$0xff]
    %v166 = vld [vmem:[#allocation2 + $0x18] sm:$0xff]
    %v167 = vld [vmem:[#allocation2 + $0x20] sm:$0xff]
    %v168 = vld [vmem:[#allocation2 + $0x28] sm:$0xff]
    %v169 = vld [vmem:[#allocation2 + $0x30] sm:$0xff]
    %v170 = vld [vmem:[#allocation2 + $0x38] sm:$0xff]
    %v171 = vld [vmem:[#allocation9] sm:$0xff]
    %v172 = vld [vmem:[#allocation9 + $0x8] sm:$0xff]
    %v173 = vld [vmem:[#allocation9 + $0x10] sm:$0xff]
    %v174 = vld [vmem:[#allocation9 + $0x18] sm:$0xff]
    %v175 = vld [vmem:[#allocation9 + $0x20] sm:$0xff]
    %v176 = vld [vmem:[#allocation9 + $0x28] sm:$0xff]
    %v177 = vld [vmem:[#allocation9 + $0x30] sm:$0xff]
    %v178 = vld [vmem:[#allocation9 + $0x38] sm:$0xff]
    %v179 = vld [vmem:[#allocation9 + $0x40] sm:$0xff]
    %v180 = vld [vmem:[#allocation9 + $0x48] sm:$0xff]
    %v181 = vld [vmem:[#allocation9 + $0x50] sm:$0xff]
    %v182 = vld [vmem:[#allocation9 + $0x58] sm:$0xff]
    %v183 = vld [vmem:[#allocation9 + $0x60] sm:$0xff]
    %v184 = vld [vmem:[#allocation9 + $0x68] sm:$0xff]
    %v185 = vld [vmem:[#allocation9 + $0x70] sm:$0xff]
    %v186 = vld [vmem:[#allocation9 + $0x78] sm:$0xff]
    %v187 = vld [vmem:[#allocation9 + $0x80] sm:$0xff]
    %v188 = vld [vmem:[#allocation9 + $0x88] sm:$0xff]
    %v189 = vld [vmem:[#allocation9 + $0x90] sm:$0xff]
    %v190 = vld [vmem:[#allocation9 + $0x98] sm:$0xff]
    %v191 = vld [vmem:[#allocation9 + $0xa0] sm:$0xff]
    %v192 = vld [vmem:[#allocation9 + $0xa8] sm:$0xff]
    %v193 = vld [vmem:[#allocation9 + $0xb0] sm:$0xff]
    %v194 = vld [vmem:[#allocation9 + $0xb8] sm:$0xff]
    %v195 = vld [vmem:[#allocation9 + $0xc0] sm:$0xff]
    %v196 = vld [vmem:[#allocation9 + $0xc8] sm:$0xff]
    %v197 = vld [vmem:[#allocation9 + $0xd0] sm:$0xff]
    %v198 = vld [vmem:[#allocation9 + $0xd8] sm:$0xff]
    %v199 = vld [vmem:[#allocation9 + $0xe0] sm:$0xff]
    %v200 = vld [vmem:[#allocation9 + $0xe8] sm:$0xff]
    %v201 = vld [vmem:[#allocation9 + $0xf0] sm:$0xff]
    %v202 = vld [vmem:[#allocation9 + $0xf8] sm:$0xff]
    %v203 = vld [vmem:[#allocation9 + $0x100] sm:$0xff]
    %v204 = vld [vmem:[#allocation9 + $0x108] sm:$0xff]
    %v205 = vld [vmem:[#allocation9 + $0x110] sm:$0xff]
    %v206 = vld [vmem:[#allocation9 + $0x118] sm:$0xff]
    %v207 = vld [vmem:[#allocation9 + $0x120] sm:$0xff]
    %v208 = vld [vmem:[#allocation9 + $0x128] sm:$0xff]
    %v209 = vld [vmem:[#allocation9 + $0x130] sm:$0xff]
    %v210 = vld [vmem:[#allocation9 + $0x138] sm:$0xff]
    %v211 = vld [vmem:[#allocation9 + $0x140] sm:$0xff]
    %v212 = vld [vmem:[#allocation9 + $0x148] sm:$0xff]
    %v213 = vld [vmem:[#allocation9 + $0x150] sm:$0xff]
    %v214 = vld [vmem:[#allocation9 + $0x158] sm:$0xff]
    %v215 = vld [vmem:[#allocation9 + $0x160] sm:$0xff]
    %v216 = vld [vmem:[#allocation9 + $0x168] sm:$0xff]
    %v217 = vld [vmem:[#allocation9 + $0x170] sm:$0xff]
    %v218 = vld [vmem:[#allocation9 + $0x178] sm:$0xff]
    %v219 = vld [vmem:[%s4] sm:$0x7]
    %v221 = vperm.slane %v219, 0
    %v222 = vperm.slane %v219, 1
    %v223 = vperm.slane %v219, 2
    %227 = vmatpush.msra.mxu0 %v216
    %228 = vmatpush.msra.mxu0 %v213
    %229 = vmatpush.msra.mxu0 %v210
    %230 = vmatpush.msra.mxu0 %v207
    %231 = vmatpush.msra.mxu0 %v204
    %232 = vmatpush.msra.mxu0 %v201
    %233 = vmatpush.msra.mxu0 %v198
    %234 = vmatpush.msra.mxu0 %v195
    %235 = vmatpush.msra.mxu0 %v192
    %236 = vmatpush.msra.mxu0 %v189
    %237 = vmatpush.msra.mxu0 %v186
    %238 = vmatpush.msra.mxu0 %v183
    %239 = vmatpush.msra.mxu0 %v180
    %240 = vmatpush.msra.mxu0 %v177
    %241 = vmatpush.msra.mxu0 %v174
    %242 = vmatpush.msra.mxu0 %v171
    %243 = vmatmul.f32.gmra.mxu0 %v163
    %v244 = vpop.f32.mrf.mxu0
    %v245 = vadd.f32 %v221, %v244
    %246 = vmatmul.f32.gmra.mxu0 %v164
    %v247 = vpop.f32.mrf.mxu0
    %v248 = vadd.f32 %v221, %v247
    %249 = vmatmul.f32.gmra.mxu0 %v165
    %v250 = vpop.f32.mrf.mxu0
    %v251 = vadd.f32 %v221, %v250
    %252 = vmatmul.f32.gmra.mxu0 %v166
    %v253 = vpop.f32.mrf.mxu0
    %v254 = vadd.f32 %v221, %v253
    %255 = vmatmul.f32.gmra.mxu0 %v167
    %v256 = vpop.f32.mrf.mxu0
    %v257 = vadd.f32 %v221, %v256
    %258 = vmatmul.f32.gmra.mxu0 %v168
    %v259 = vpop.f32.mrf.mxu0
    %v260 = vadd.f32 %v221, %v259
    %261 = vmatmul.f32.gmra.mxu0 %v169
    %v262 = vpop.f32.mrf.mxu0
    %v263 = vadd.f32 %v221, %v262
    %264 = vmatmul.f32.gmra.mxu0 %v170
    %v265 = vpop.f32.mrf.mxu0
    %v266 = vadd.f32 %v221, %v265
    %267 = vdwg.mxu0
    %268 = vmatpush.msra.mxu0 %v217
    %269 = vmatpush.msra.mxu0 %v214
    %270 = vmatpush.msra.mxu0 %v211
    %271 = vmatpush.msra.mxu0 %v208
    %272 = vmatpush.msra.mxu0 %v205
    %273 = vmatpush.msra.mxu0 %v202
    %274 = vmatpush.msra.mxu0 %v199
    %275 = vmatpush.msra.mxu0 %v196
    %276 = vmatpush.msra.mxu0 %v193
    %277 = vmatpush.msra.mxu0 %v190
    %278 = vmatpush.msra.mxu0 %v187
    %279 = vmatpush.msra.mxu0 %v184
    %280 = vmatpush.msra.mxu0 %v181
    %281 = vmatpush.msra.mxu0 %v178
    %282 = vmatpush.msra.mxu0 %v175
    %283 = vmatpush.msra.mxu0 %v172
    %284 = vmatmul.f32.gmra.mxu0 %v163
    %v285 = vpop.f32.mrf.mxu0
    %v286 = vadd.f32 %v222, %v285
    %287 = vmatmul.f32.gmra.mxu0 %v164
    %v288 = vpop.f32.mrf.mxu0
    %v289 = vadd.f32 %v222, %v288
    %290 = vmatmul.f32.gmra.mxu0 %v165
    %v291 = vpop.f32.mrf.mxu0
    %v292 = vadd.f32 %v222, %v291
    %293 = vmatmul.f32.gmra.mxu0 %v166
    %v294 = vpop.f32.mrf.mxu0
    %v295 = vadd.f32 %v222, %v294
    %296 = vmatmul.f32.gmra.mxu0 %v167
    %v297 = vpop.f32.mrf.mxu0
    %v298 = vadd.f32 %v222, %v297
    %299 = vmatmul.f32.gmra.mxu0 %v168
    %v300 = vpop.f32.mrf.mxu0
    %v301 = vadd.f32 %v222, %v300
    %302 = vmatmul.f32.gmra.mxu0 %v169
    %v303 = vpop.f32.mrf.mxu0
    %v304 = vadd.f32 %v222, %v303
    %305 = vmatmul.f32.gmra.mxu0 %v170
    %v306 = vpop.f32.mrf.mxu0
    %v307 = vadd.f32 %v222, %v306
    %308 = vdwg.mxu0
    %309 = vmatpush.msra.mxu0 %v218
    %310 = vmatpush.msra.mxu0 %v215
    %311 = vmatpush.msra.mxu0 %v212
    %312 = vmatpush.msra.mxu0 %v209
    %313 = vmatpush.msra.mxu0 %v206
    %314 = vmatpush.msra.mxu0 %v203
    %315 = vmatpush.msra.mxu0 %v200
    %316 = vmatpush.msra.mxu0 %v197
    %317 = vmatpush.msra.mxu0 %v194
    %318 = vmatpush.msra.mxu0 %v191
    %319 = vmatpush.msra.mxu0 %v188
    %320 = vmatpush.msra.mxu0 %v185
    %321 = vmatpush.msra.mxu0 %v182
    %322 = vmatpush.msra.mxu0 %v179
    %323 = vmatpush.msra.mxu0 %v176
    %324 = vmatpush.msra.mxu0 %v173
    %325 = vmatmul.f32.gmra.mxu0 %v163
    %v326 = vpop.f32.mrf.mxu0
    %v327 = vadd.f32 %v223, %v326
    %328 = vmatmul.f32.gmra.mxu0 %v164
    %v329 = vpop.f32.mrf.mxu0
    %v330 = vadd.f32 %v223, %v329
    %331 = vmatmul.f32.gmra.mxu0 %v165
    %v332 = vpop.f32.mrf.mxu0
    %v333 = vadd.f32 %v223, %v332
    %334 = vmatmul.f32.gmra.mxu0 %v166
    %v335 = vpop.f32.mrf.mxu0
    %v336 = vadd.f32 %v223, %v335
    %337 = vmatmul.f32.gmra.mxu0 %v167
    %v338 = vpop.f32.mrf.mxu0
    %v339 = vadd.f32 %v223, %v338
    %340 = vmatmul.f32.gmra.mxu0 %v168
    %v341 = vpop.f32.mrf.mxu0
    %v342 = vadd.f32 %v223, %v341
    %343 = vmatmul.f32.gmra.mxu0 %v169
    %v344 = vpop.f32.mrf.mxu0
    %v345 = vadd.f32 %v223, %v344
    %346 = vmatmul.f32.gmra.mxu0 %v170
    %v347 = vpop.f32.mrf.mxu0
    %v348 = vadd.f32 %v223, %v347
    %349 = vdwg.mxu0
    %350 = vst [vmem:[#allocation3] sm:$0xff] %v245
    %351 = vst [vmem:[#allocation3 + $0x8] sm:$0xff] %v286
    %352 = vst [vmem:[#allocation3 + $0x10] sm:$0xff] %v327
    %353 = vst [vmem:[#allocation3 + $0x18] sm:$0xff] %v248
    %354 = vst [vmem:[#allocation3 + $0x20] sm:$0xff] %v289
    %355 = vst [vmem:[#allocation3 + $0x28] sm:$0xff] %v330
    %356 = vst [vmem:[#allocation3 + $0x30] sm:$0xff] %v251
    %357 = vst [vmem:[#allocation3 + $0x38] sm:$0xff] %v292
    %358 = vst [vmem:[#allocation3 + $0x40] sm:$0xff] %v333
    %359 = vst [vmem:[#allocation3 + $0x48] sm:$0xff] %v254
    %360 = vst [vmem:[#allocation3 + $0x50] sm:$0xff] %v295
    %361 = vst [vmem:[#allocation3 + $0x58] sm:$0xff] %v336
    %362 = vst [vmem:[#allocation3 + $0x60] sm:$0xff] %v257
    %363 = vst [vmem:[#allocation3 + $0x68] sm:$0xff] %v298
    %364 = vst [vmem:[#allocation3 + $0x70] sm:$0xff] %v339
    %365 = vst [vmem:[#allocation3 + $0x78] sm:$0xff] %v260
    %366 = vst [vmem:[#allocation3 + $0x80] sm:$0xff] %v301
    %367 = vst [vmem:[#allocation3 + $0x88] sm:$0xff] %v342
    %368 = vst [vmem:[#allocation3 + $0x90] sm:$0xff] %v263
    %369 = vst [vmem:[#allocation3 + $0x98] sm:$0xff] %v304
    %370 = vst [vmem:[#allocation3 + $0xa0] sm:$0xff] %v345
    %371 = vst [vmem:[#allocation3 + $0xa8] sm:$0xff] %v266
    %372 = vst [vmem:[#allocation3 + $0xb0] sm:$0xff] %v307
    %373 = vst [vmem:[#allocation3 + $0xb8] sm:$0xff] %v348
    %s374 = smul.u32 0, 3
    %s375 = smul.addr %s374, 8
    %s376 = scalar_lea.vmem [#allocation3], %s375
    %v377 = vld [vmem:[%s376] sm:$0xff]
    %v378 = vld [vmem:[%s376 + $0x8] sm:$0xff]
    %v379 = vld [vmem:[%s376 + $0x10] sm:$0xff]
    %v380 = vld [vmem:[#allocation11] sm:$0xff]
    %v381 = vld [vmem:[#allocation11 + $0x8] sm:$0xff]
    %v382 = vld [vmem:[#allocation11 + $0x10] sm:$0xff]
    %v383 = vld [vmem:[#allocation11 + $0x18] sm:$0xff]
    %v384 = vld [vmem:[#allocation11 + $0x20] sm:$0xff]
    %v385 = vld [vmem:[#allocation11 + $0x28] sm:$0xff]
    %v386 = vld [vmem:[#allocation11 + $0x30] sm:$0xff]
    %v387 = vld [vmem:[#allocation11 + $0x38] sm:$0xff]
    %v388 = vld [vmem:[#allocation11 + $0x40] sm:$0xff]
    %v389 = vld [vmem:[#allocation11 + $0x48] sm:$0xff]
    %v390 = vld [vmem:[#allocation11 + $0x50] sm:$0xff]
    %v391 = vld [vmem:[#allocation11 + $0x58] sm:$0xff]
    %v392 = vld [vmem:[#allocation11 + $0x60] sm:$0xff]
    %v393 = vld [vmem:[#allocation11 + $0x68] sm:$0xff]
    %v394 = vld [vmem:[#allocation11 + $0x70] sm:$0xff]
    %v395 = vld [vmem:[#allocation11 + $0x78] sm:$0xff]
    %v396 = vld [vmem:[#allocation11 + $0x80] sm:$0xff]
    %v397 = vld [vmem:[#allocation11 + $0x88] sm:$0xff]
    %v398 = vld [vmem:[#allocation11 + $0x90] sm:$0xff]
    %v399 = vld [vmem:[#allocation11 + $0x98] sm:$0xff]
    %v400 = vld [vmem:[#allocation11 + $0xa0] sm:$0xff]
    %v401 = vld [vmem:[#allocation11 + $0xa8] sm:$0xff]
    %v402 = vld [vmem:[#allocation11 + $0xb0] sm:$0xff]
    %v403 = vld [vmem:[#allocation11 + $0xb8] sm:$0xff]
    %v404 = vld [vmem:[#allocation11 + $0xc0] sm:$0xff]
    %v405 = vld [vmem:[#allocation11 + $0xc8] sm:$0xff]
    %v406 = vld [vmem:[#allocation11 + $0xd0] sm:$0xff]
    %v407 = vld [vmem:[#allocation11 + $0xd8] sm:$0xff]
    %v408 = vld [vmem:[#allocation11 + $0xe0] sm:$0xff]
    %v409 = vld [vmem:[#allocation11 + $0xe8] sm:$0xff]
    %v410 = vld [vmem:[#allocation11 + $0xf0] sm:$0xff]
    %v411 = vld [vmem:[#allocation11 + $0xf8] sm:$0xff]
    %v412 = vld [vmem:[#allocation11 + $0x100] sm:$0xff]
    %v413 = vld [vmem:[#allocation11 + $0x108] sm:$0xff]
    %v414 = vld [vmem:[#allocation11 + $0x110] sm:$0xff]
    %v415 = vld [vmem:[#allocation11 + $0x118] sm:$0xff]
    %v416 = vld [vmem:[#allocation11 + $0x120] sm:$0xff]
    %v417 = vld [vmem:[#allocation11 + $0x128] sm:$0xff]
    %v418 = vld [vmem:[#allocation11 + $0x130] sm:$0xff]
    %v419 = vld [vmem:[#allocation11 + $0x138] sm:$0xff]
    %v420 = vld [vmem:[#allocation11 + $0x140] sm:$0xff]
    %v421 = vld [vmem:[#allocation11 + $0x148] sm:$0xff]
    %v422 = vld [vmem:[#allocation11 + $0x150] sm:$0xff]
    %v423 = vld [vmem:[#allocation11 + $0x158] sm:$0xff]
    %v424 = vld [vmem:[#allocation11 + $0x160] sm:$0xff]
    %v425 = vld [vmem:[#allocation11 + $0x168] sm:$0xff]
    %v426 = vld [vmem:[#allocation11 + $0x170] sm:$0xff]
    %v427 = vld [vmem:[#allocation11 + $0x178] sm:$0xff]
    %v428 = vld [vmem:[#allocation12] sm:$0x7]
    %v430 = vperm.slane %v428, 0
    %v431 = vperm.slane %v428, 1
    %v432 = vperm.slane %v428, 2
    %436 = vmatpush.msra.mxu0 %v425
    %437 = vmatpush.msra.mxu0 %v422
    %438 = vmatpush.msra.mxu0 %v419
    %439 = vmatpush.msra.mxu0 %v416
    %440 = vmatpush.msra.mxu0 %v413
    %441 = vmatpush.msra.mxu0 %v410
    %442 = vmatpush.msra.mxu0 %v407
    %443 = vmatpush.msra.mxu0 %v404
    %444 = vmatpush.msra.mxu0 %v401
    %445 = vmatpush.msra.mxu0 %v398
    %446 = vmatpush.msra.mxu0 %v395
    %447 = vmatpush.msra.mxu0 %v392
    %448 = vmatpush.msra.mxu0 %v389
    %449 = vmatpush.msra.mxu0 %v386
    %450 = vmatpush.msra.mxu0 %v383
    %451 = vmatpush.msra.mxu0 %v380
    %452 = vmatmul.f32.gmra.mxu0 0.0
    %v453 = vpop.f32.mrf.mxu0
    %v454 = vadd.f32 %v430, %v453
    %455 = vdwg.mxu0
    %456 = vmatpush.msra.mxu0 %v426
    %457 = vmatpush.msra.mxu0 %v423
    %458 = vmatpush.msra.mxu0 %v420
    %459 = vmatpush.msra.mxu0 %v417
    %460 = vmatpush.msra.mxu0 %v414
    %461 = vmatpush.msra.mxu0 %v411
    %462 = vmatpush.msra.mxu0 %v408
    %463 = vmatpush.msra.mxu0 %v405
    %464 = vmatpush.msra.mxu0 %v402
    %465 = vmatpush.msra.mxu0 %v399
    %466 = vmatpush.msra.mxu0 %v396
    %467 = vmatpush.msra.mxu0 %v393
    %468 = vmatpush.msra.mxu0 %v390
    %469 = vmatpush.msra.mxu0 %v387
    %470 = vmatpush.msra.mxu0 %v384
    %471 = vmatpush.msra.mxu0 %v381
    %472 = vmatmul.f32.gmra.mxu0 0.0
    %v473 = vpop.f32.mrf.mxu0
    %v474 = vadd.f32 %v431, %v473
    %475 = vdwg.mxu0
    %476 = vmatpush.msra.mxu0 %v427
    %477 = vmatpush.msra.mxu0 %v424
    %478 = vmatpush.msra.mxu0 %v421
    %479 = vmatpush.msra.mxu0 %v418
    %480 = vmatpush.msra.mxu0 %v415
    %481 = vmatpush.msra.mxu0 %v412
    %482 = vmatpush.msra.mxu0 %v409
    %483 = vmatpush.msra.mxu0 %v406
    %484 = vmatpush.msra.mxu0 %v403
    %485 = vmatpush.msra.mxu0 %v400
    %486 = vmatpush.msra.mxu0 %v397
    %487 = vmatpush.msra.mxu0 %v394
    %488 = vmatpush.msra.mxu0 %v391
    %489 = vmatpush.msra.mxu0 %v388
    %490 = vmatpush.msra.mxu0 %v385
    %491 = vmatpush.msra.mxu0 %v382
    %492 = vmatmul.f32.gmra.mxu0 0.0
    %v493 = vpop.f32.mrf.mxu0
    %v494 = vadd.f32 %v432, %v493
    %495 = vdwg.mxu0
    %v496 = vadd.f32 %v377, %v454
    %v497 = vxor.u32 %v496, 2147483648
    %v498 = vmul.f32 %v497, 1.442695
    %v499 = vpow.pop %v498
    %v500 = vadd.f32 %v499, 1.0
    %v501 = vrcp.pop %v500
    %v502 = vmul.f32 %v500, %v501
    %v503 = vsub.f32 1.0, %v502
    %v504 = vmul.f32 %v501, %v503
    %v505 = vadd.f32 %v501, %v504
    %vm506 = vweird.f32 %v500
    %vm507 = vweird.f32 %v501
    %vm508 = vmor %vm506, %vm507
    %v509 = vsel %vm508, %v501, %v505
    %v510 = vand.u32 2147483647, %v500
    %vm511 = vcmp.eq.f32.partialorder %v510, 8.507059e+37
    %v512 = vand.u32 %v500, 2147483648
    %v513 = vor.u32 1.1754944e-38, %v512
    %v514 = vsel %vm511, %v513, %v509
    %v515 = vmul.f32 1.0, %v514
    %v516 = vadd.f32 %v378, %v474
    %v517 = vxor.u32 %v516, 2147483648
    %v518 = vmul.f32 %v517, 1.442695
    %v519 = vpow.pop %v518
    %v520 = vadd.f32 %v519, 1.0
    %v521 = vrcp.pop %v520
    %v522 = vmul.f32 %v520, %v521
    %v523 = vsub.f32 1.0, %v522
    %v524 = vmul.f32 %v521, %v523
    %v525 = vadd.f32 %v521, %v524
    %vm526 = vweird.f32 %v520
    %vm527 = vweird.f32 %v521
    %vm528 = vmor %vm526, %vm527
    %v529 = vsel %vm528, %v521, %v525
    %v530 = vand.u32 2147483647, %v520
    %vm531 = vcmp.eq.f32.partialorder %v530, 8.507059e+37
    %v532 = vand.u32 %v520, 2147483648
    %v533 = vor.u32 1.1754944e-38, %v532
    %v534 = vsel %vm531, %v533, %v529
    %v535 = vmul.f32 1.0, %v534
    %v536 = vmul.f32 %v515, %v494
    %v537 = vadd.f32 %v379, %v536
    %v538 = vtanh.pop %v537
    %v539 = vsub.f32 1.0, %v535
    %v540 = vmul.f32 %v539, %v538
    %v541 = vmul.f32 %v535, 0.0
    %v542 = vadd.f32 %v540, %v541
    %s543 = smul.u32 1, 3
    %s544 = smul.addr %s543, 8
    %s545 = scalar_lea.vmem [#allocation3], %s544
    %v546 = vld [vmem:[%s545] sm:$0xff]
    %v547 = vld [vmem:[%s545 + $0x8] sm:$0xff]
    %v548 = vld [vmem:[%s545 + $0x10] sm:$0xff]
    %549 = vmatpush.msra.mxu0 %v425
    %550 = vmatpush.msra.mxu0 %v422
    %551 = vmatpush.msra.mxu0 %v419
    %552 = vmatpush.msra.mxu0 %v416
    %553 = vmatpush.msra.mxu0 %v413
    %554 = vmatpush.msra.mxu0 %v410
    %555 = vmatpush.msra.mxu0 %v407
    %556 = vmatpush.msra.mxu0 %v404
    %557 = vmatpush.msra.mxu0 %v401
    %558 = vmatpush.msra.mxu0 %v398
    %559 = vmatpush.msra.mxu0 %v395
    %560 = vmatpush.msra.mxu0 %v392
    %561 = vmatpush.msra.mxu0 %v389
    %562 = vmatpush.msra.mxu0 %v386
    %563 = vmatpush.msra.mxu0 %v383
    %564 = vmatpush.msra.mxu0 %v380
    %565 = vmatmul.f32.gmra.mxu0 %v542
    %v566 = vpop.f32.mrf.mxu0
    %v567 = vadd.f32 %v430, %v566
    %568 = vdwg.mxu0
    %569 = vmatpush.msra.mxu0 %v426
    %570 = vmatpush.msra.mxu0 %v423
    %571 = vmatpush.msra.mxu0 %v420
    %572 = vmatpush.msra.mxu0 %v417
    %573 = vmatpush.msra.mxu0 %v414
    %574 = vmatpush.msra.mxu0 %v411
    %575 = vmatpush.msra.mxu0 %v408
    %576 = vmatpush.msra.mxu0 %v405
    %577 = vmatpush.msra.mxu0 %v402
    %578 = vmatpush.msra.mxu0 %v399
    %579 = vmatpush.msra.mxu0 %v396
    %580 = vmatpush.msra.mxu0 %v393
    %581 = vmatpush.msra.mxu0 %v390
    %582 = vmatpush.msra.mxu0 %v387
    %583 = vmatpush.msra.mxu0 %v384
    %584 = vmatpush.msra.mxu0 %v381
    %585 = vmatmul.f32.gmra.mxu0 %v542
    %v586 = vpop.f32.mrf.mxu0
    %v587 = vadd.f32 %v431, %v586
    %588 = vdwg.mxu0
    %589 = vmatpush.msra.mxu0 %v427
    %590 = vmatpush.msra.mxu0 %v424
    %591 = vmatpush.msra.mxu0 %v421
    %592 = vmatpush.msra.mxu0 %v418
    %593 = vmatpush.msra.mxu0 %v415
    %594 = vmatpush.msra.mxu0 %v412
    %595 = vmatpush.msra.mxu0 %v409
    %596 = vmatpush.msra.mxu0 %v406
    %597 = vmatpush.msra.mxu0 %v403
    %598 = vmatpush.msra.mxu0 %v400
    %599 = vmatpush.msra.mxu0 %v397
    %600 = vmatpush.msra.mxu0 %v394
    %601 = vmatpush.msra.mxu0 %v391
    %602 = vmatpush.msra.mxu0 %v388
    %603 = vmatpush.msra.mxu0 %v385
    %604 = vmatpush.msra.mxu0 %v382
    %605 = vmatmul.f32.gmra.mxu0 %v542
    %v606 = vpop.f32.mrf.mxu0
    %v607 = vadd.f32 %v432, %v606
    %608 = vdwg.mxu0
    %v609 = vadd.f32 %v546, %v567
    %v610 = vxor.u32 %v609, 2147483648
    %v611 = vmul.f32 %v610, 1.442695
    %v612 = vpow.pop %v611
    %v613 = vadd.f32 %v612, 1.0
    %v614 = vrcp.pop %v613
    %v615 = vmul.f32 %v613, %v614
    %v616 = vsub.f32 1.0, %v615
    %v617 = vmul.f32 %v614, %v616
    %v618 = vadd.f32 %v614, %v617
    %vm619 = vweird.f32 %v613
    %vm620 = vweird.f32 %v614
    %vm621 = vmor %vm619, %vm620
    %v622 = vsel %vm621, %v614, %v618
    %v623 = vand.u32 2147483647, %v613
    %vm624 = vcmp.eq.f32.partialorder %v623, 8.507059e+37
    %v625 = vand.u32 %v613, 2147483648
    %v626 = vor.u32 1.1754944e-38, %v625
    %v627 = vsel %vm624, %v626, %v622
    %v628 = vmul.f32 1.0, %v627
    %v629 = vadd.f32 %v547, %v587
    %v630 = vxor.u32 %v629, 2147483648
    %v631 = vmul.f32 %v630, 1.442695
    %v632 = vpow.pop %v631
    %v633 = vadd.f32 %v632, 1.0
    %v634 = vrcp.pop %v633
    %v635 = vmul.f32 %v633, %v634
    %v636 = vsub.f32 1.0, %v635
    %v637 = vmul.f32 %v634, %v636
    %v638 = vadd.f32 %v634, %v637
    %vm639 = vweird.f32 %v633
    %vm640 = vweird.f32 %v634
    %vm641 = vmor %vm639, %vm640
    %v642 = vsel %vm641, %v634, %v638
    %v643 = vand.u32 2147483647, %v633
    %vm644 = vcmp.eq.f32.partialorder %v643, 8.507059e+37
    %v645 = vand.u32 %v633, 2147483648
    %v646 = vor.u32 1.1754944e-38, %v645
    %v647 = vsel %vm644, %v646, %v642
    %v648 = vmul.f32 1.0, %v647
    %v649 = vmul.f32 %v628, %v607
    %v650 = vadd.f32 %v548, %v649
    %v651 = vtanh.pop %v650
    %v652 = vsub.f32 1.0, %v648
    %v653 = vmul.f32 %v652, %v651
    %v654 = vmul.f32 %v648, %v542
    %v655 = vadd.f32 %v653, %v654
    %s656 = smul.u32 2, 3
    %s657 = smul.addr %s656, 8
    %s658 = scalar_lea.vmem [#allocation3], %s657
    %v659 = vld [vmem:[%s658] sm:$0xff]
    %v660 = vld [vmem:[%s658 + $0x8] sm:$0xff]
    %v661 = vld [vmem:[%s658 + $0x10] sm:$0xff]
    %662 = vmatpush.msra.mxu0 %v425
    %663 = vmatpush.msra.mxu0 %v422
    %664 = vmatpush.msra.mxu0 %v419
    %665 = vmatpush.msra.mxu0 %v416
    %666 = vmatpush.msra.mxu0 %v413
    %667 = vmatpush.msra.mxu0 %v410
    %668 = vmatpush.msra.mxu0 %v407
    %669 = vmatpush.msra.mxu0 %v404
    %670 = vmatpush.msra.mxu0 %v401
    %671 = vmatpush.msra.mxu0 %v398
    %672 = vmatpush.msra.mxu0 %v395
    %673 = vmatpush.msra.mxu0 %v392
    %674 = vmatpush.msra.mxu0 %v389
    %675 = vmatpush.msra.mxu0 %v386
    %676 = vmatpush.msra.mxu0 %v383
    %677 = vmatpush.msra.mxu0 %v380
    %678 = vmatmul.f32.gmra.mxu0 %v655
    %v679 = vpop.f32.mrf.mxu0
    %v680 = vadd.f32 %v430, %v679
    %681 = vdwg.mxu0
    %682 = vmatpush.msra.mxu0 %v426
    %683 = vmatpush.msra.mxu0 %v423
    %684 = vmatpush.msra.mxu0 %v420
    %685 = vmatpush.msra.mxu0 %v417
    %686 = vmatpush.msra.mxu0 %v414
    %687 = vmatpush.msra.mxu0 %v411
    %688 = vmatpush.msra.mxu0 %v408
    %689 = vmatpush.msra.mxu0 %v405
    %690 = vmatpush.msra.mxu0 %v402
    %691 = vmatpush.msra.mxu0 %v399
    %692 = vmatpush.msra.mxu0 %v396
    %693 = vmatpush.msra.mxu0 %v393
    %694 = vmatpush.msra.mxu0 %v390
    %695 = vmatpush.msra.mxu0 %v387
    %696 = vmatpush.msra.mxu0 %v384
    %697 = vmatpush.msra.mxu0 %v381
    %698 = vmatmul.f32.gmra.mxu0 %v655
    %v699 = vpop.f32.mrf.mxu0
    %v700 = vadd.f32 %v431, %v699
    %701 = vdwg.mxu0
    %702 = vmatpush.msra.mxu0 %v427
    %703 = vmatpush.msra.mxu0 %v424
    %704 = vmatpush.msra.mxu0 %v421
    %705 = vmatpush.msra.mxu0 %v418
    %706 = vmatpush.msra.mxu0 %v415
    %707 = vmatpush.msra.mxu0 %v412
    %708 = vmatpush.msra.mxu0 %v409
    %709 = vmatpush.msra.mxu0 %v406
    %710 = vmatpush.msra.mxu0 %v403
    %711 = vmatpush.msra.mxu0 %v400
    %712 = vmatpush.msra.mxu0 %v397
    %713 = vmatpush.msra.mxu0 %v394
    %714 = vmatpush.msra.mxu0 %v391
    %715 = vmatpush.msra.mxu0 %v388
    %716 = vmatpush.msra.mxu0 %v385
    %717 = vmatpush.msra.mxu0 %v382
    %718 = vmatmul.f32.gmra.mxu0 %v655
    %v719 = vpop.f32.mrf.mxu0
    %v720 = vadd.f32 %v432, %v719
    %721 = vdwg.mxu0
    %v722 = vadd.f32 %v659, %v680
    %v723 = vxor.u32 %v722, 2147483648
    %v724 = vmul.f32 %v723, 1.442695
    %v725 = vpow.pop %v724
    %v726 = vadd.f32 %v725, 1.0
    %v727 = vrcp.pop %v726
    %v728 = vmul.f32 %v726, %v727
    %v729 = vsub.f32 1.0, %v728
    %v730 = vmul.f32 %v727, %v729
    %v731 = vadd.f32 %v727, %v730
    %vm732 = vweird.f32 %v726
    %vm733 = vweird.f32 %v727
    %vm734 = vmor %vm732, %vm733
    %v735 = vsel %vm734, %v727, %v731
    %v736 = vand.u32 2147483647, %v726
    %vm737 = vcmp.eq.f32.partialorder %v736, 8.507059e+37
    %v738 = vand.u32 %v726, 2147483648
    %v739 = vor.u32 1.1754944e-38, %v738
    %v740 = vsel %vm737, %v739, %v735
    %v741 = vmul.f32 1.0, %v740
    %v742 = vadd.f32 %v660, %v700
    %v743 = vxor.u32 %v742, 2147483648
    %v744 = vmul.f32 %v743, 1.442695
    %v745 = vpow.pop %v744
    %v746 = vadd.f32 %v745, 1.0
    %v747 = vrcp.pop %v746
    %v748 = vmul.f32 %v746, %v747
    %v749 = vsub.f32 1.0, %v748
    %v750 = vmul.f32 %v747, %v749
    %v751 = vadd.f32 %v747, %v750
    %vm752 = vweird.f32 %v746
    %vm753 = vweird.f32 %v747
    %vm754 = vmor %vm752, %vm753
    %v755 = vsel %vm754, %v747, %v751
    %v756 = vand.u32 2147483647, %v746
    %vm757 = vcmp.eq.f32.partialorder %v756, 8.507059e+37
    %v758 = vand.u32 %v746, 2147483648
    %v759 = vor.u32 1.1754944e-38, %v758
    %v760 = vsel %vm757, %v759, %v755
    %v761 = vmul.f32 1.0, %v760
    %v762 = vmul.f32 %v741, %v720
    %v763 = vadd.f32 %v661, %v762
    %v764 = vtanh.pop %v763
    %v765 = vsub.f32 1.0, %v761
    %v766 = vmul.f32 %v765, %v764
    %v767 = vmul.f32 %v761, %v655
    %v768 = vadd.f32 %v766, %v767
    %s769 = smul.u32 3, 3
    %s770 = smul.addr %s769, 8
    %s771 = scalar_lea.vmem [#allocation3], %s770
    %v772 = vld [vmem:[%s771] sm:$0xff]
    %v773 = vld [vmem:[%s771 + $0x8] sm:$0xff]
    %v774 = vld [vmem:[%s771 + $0x10] sm:$0xff]
    %775 = vmatpush.msra.mxu0 %v425
    %776 = vmatpush.msra.mxu0 %v422
    %777 = vmatpush.msra.mxu0 %v419
    %778 = vmatpush.msra.mxu0 %v416
    %779 = vmatpush.msra.mxu0 %v413
    %780 = vmatpush.msra.mxu0 %v410
    %781 = vmatpush.msra.mxu0 %v407
    %782 = vmatpush.msra.mxu0 %v404
    %783 = vmatpush.msra.mxu0 %v401
    %784 = vmatpush.msra.mxu0 %v398
    %785 = vmatpush.msra.mxu0 %v395
    %786 = vmatpush.msra.mxu0 %v392
    %787 = vmatpush.msra.mxu0 %v389
    %788 = vmatpush.msra.mxu0 %v386
    %789 = vmatpush.msra.mxu0 %v383
    %790 = vmatpush.msra.mxu0 %v380
    %791 = vmatmul.f32.gmra.mxu0 %v768
    %v792 = vpop.f32.mrf.mxu0
    %v793 = vadd.f32 %v430, %v792
    %794 = vdwg.mxu0
    %795 = vmatpush.msra.mxu0 %v426
    %796 = vmatpush.msra.mxu0 %v423
    %797 = vmatpush.msra.mxu0 %v420
    %798 = vmatpush.msra.mxu0 %v417
    %799 = vmatpush.msra.mxu0 %v414
    %800 = vmatpush.msra.mxu0 %v411
    %801 = vmatpush.msra.mxu0 %v408
    %802 = vmatpush.msra.mxu0 %v405
    %803 = vmatpush.msra.mxu0 %v402
    %804 = vmatpush.msra.mxu0 %v399
    %805 = vmatpush.msra.mxu0 %v396
    %806 = vmatpush.msra.mxu0 %v393
    %807 = vmatpush.msra.mxu0 %v390
    %808 = vmatpush.msra.mxu0 %v387
    %809 = vmatpush.msra.mxu0 %v384
    %810 = vmatpush.msra.mxu0 %v381
    %811 = vmatmul.f32.gmra.mxu0 %v768
    %v812 = vpop.f32.mrf.mxu0
    %v813 = vadd.f32 %v431, %v812
    %814 = vdwg.mxu0
    %815 = vmatpush.msra.mxu0 %v427
    %816 = vmatpush.msra.mxu0 %v424
    %817 = vmatpush.msra.mxu0 %v421
    %818 = vmatpush.msra.mxu0 %v418
    %819 = vmatpush.msra.mxu0 %v415
    %820 = vmatpush.msra.mxu0 %v412
    %821 = vmatpush.msra.mxu0 %v409
    %822 = vmatpush.msra.mxu0 %v406
    %823 = vmatpush.msra.mxu0 %v403
    %824 = vmatpush.msra.mxu0 %v400
    %825 = vmatpush.msra.mxu0 %v397
    %826 = vmatpush.msra.mxu0 %v394
    %827 = vmatpush.msra.mxu0 %v391
    %828 = vmatpush.msra.mxu0 %v388
    %829 = vmatpush.msra.mxu0 %v385
    %830 = vmatpush.msra.mxu0 %v382
    %831 = vmatmul.f32.gmra.mxu0 %v768
    %v832 = vpop.f32.mrf.mxu0
    %v833 = vadd.f32 %v432, %v832
    %834 = vdwg.mxu0
    %v835 = vadd.f32 %v772, %v793
    %v836 = vxor.u32 %v835, 2147483648
    %v837 = vmul.f32 %v836, 1.442695
    %v838 = vpow.pop %v837
    %v839 = vadd.f32 %v838, 1.0
    %v840 = vrcp.pop %v839
    %v841 = vmul.f32 %v839, %v840
    %v842 = vsub.f32 1.0, %v841
    %v843 = vmul.f32 %v840, %v842
    %v844 = vadd.f32 %v840, %v843
    %vm845 = vweird.f32 %v839
    %vm846 = vweird.f32 %v840
    %vm847 = vmor %vm845, %vm846
    %v848 = vsel %vm847, %v840, %v844
    %v849 = vand.u32 2147483647, %v839
    %vm850 = vcmp.eq.f32.partialorder %v849, 8.507059e+37
    %v851 = vand.u32 %v839, 2147483648
    %v852 = vor.u32 1.1754944e-38, %v851
    %v853 = vsel %vm850, %v852, %v848
    %v854 = vmul.f32 1.0, %v853
    %v855 = vadd.f32 %v773, %v813
    %v856 = vxor.u32 %v855, 2147483648
    %v857 = vmul.f32 %v856, 1.442695
    %v858 = vpow.pop %v857
    %v859 = vadd.f32 %v858, 1.0
    %v860 = vrcp.pop %v859
    %v861 = vmul.f32 %v859, %v860
    %v862 = vsub.f32 1.0, %v861
    %v863 = vmul.f32 %v860, %v862
    %v864 = vadd.f32 %v860, %v863
    %vm865 = vweird.f32 %v859
    %vm866 = vweird.f32 %v860
    %vm867 = vmor %vm865, %vm866
    %v868 = vsel %vm867, %v860, %v864
    %v869 = vand.u32 2147483647, %v859
    %vm870 = vcmp.eq.f32.partialorder %v869, 8.507059e+37
    %v871 = vand.u32 %v859, 2147483648
    %v872 = vor.u32 1.1754944e-38, %v871
    %v873 = vsel %vm870, %v872, %v868
    %v874 = vmul.f32 1.0, %v873
    %v875 = vmul.f32 %v854, %v833
    %v876 = vadd.f32 %v774, %v875
    %v877 = vtanh.pop %v876
    %v878 = vsub.f32 1.0, %v874
    %v879 = vmul.f32 %v878, %v877
    %v880 = vmul.f32 %v874, %v768
    %v881 = vadd.f32 %v879, %v880
    %s882 = smul.u32 4, 3
    %s883 = smul.addr %s882, 8
    %s884 = scalar_lea.vmem [#allocation3], %s883
    %v885 = vld [vmem:[%s884] sm:$0xff]
    %v886 = vld [vmem:[%s884 + $0x8] sm:$0xff]
    %v887 = vld [vmem:[%s884 + $0x10] sm:$0xff]
    %888 = vmatpush.msra.mxu0 %v425
    %889 = vmatpush.msra.mxu0 %v422
    %890 = vmatpush.msra.mxu0 %v419
    %891 = vmatpush.msra.mxu0 %v416
    %892 = vmatpush.msra.mxu0 %v413
    %893 = vmatpush.msra.mxu0 %v410
    %894 = vmatpush.msra.mxu0 %v407
    %895 = vmatpush.msra.mxu0 %v404
    %896 = vmatpush.msra.mxu0 %v401
    %897 = vmatpush.msra.mxu0 %v398
    %898 = vmatpush.msra.mxu0 %v395
    %899 = vmatpush.msra.mxu0 %v392
    %900 = vmatpush.msra.mxu0 %v389
    %901 = vmatpush.msra.mxu0 %v386
    %902 = vmatpush.msra.mxu0 %v383
    %903 = vmatpush.msra.mxu0 %v380
    %904 = vmatmul.f32.gmra.mxu0 %v881
    %v905 = vpop.f32.mrf.mxu0
    %v906 = vadd.f32 %v430, %v905
    %907 = vdwg.mxu0
    %908 = vmatpush.msra.mxu0 %v426
    %909 = vmatpush.msra.mxu0 %v423
    %910 = vmatpush.msra.mxu0 %v420
    %911 = vmatpush.msra.mxu0 %v417
    %912 = vmatpush.msra.mxu0 %v414
    %913 = vmatpush.msra.mxu0 %v411
    %914 = vmatpush.msra.mxu0 %v408
    %915 = vmatpush.msra.mxu0 %v405
    %916 = vmatpush.msra.mxu0 %v402
    %917 = vmatpush.msra.mxu0 %v399
    %918 = vmatpush.msra.mxu0 %v396
    %919 = vmatpush.msra.mxu0 %v393
    %920 = vmatpush.msra.mxu0 %v390
    %921 = vmatpush.msra.mxu0 %v387
    %922 = vmatpush.msra.mxu0 %v384
    %923 = vmatpush.msra.mxu0 %v381
    %924 = vmatmul.f32.gmra.mxu0 %v881
    %v925 = vpop.f32.mrf.mxu0
    %v926 = vadd.f32 %v431, %v925
    %927 = vdwg.mxu0
    %928 = vmatpush.msra.mxu0 %v427
    %929 = vmatpush.msra.mxu0 %v424
    %930 = vmatpush.msra.mxu0 %v421
    %931 = vmatpush.msra.mxu0 %v418
    %932 = vmatpush.msra.mxu0 %v415
    %933 = vmatpush.msra.mxu0 %v412
    %934 = vmatpush.msra.mxu0 %v409
    %935 = vmatpush.msra.mxu0 %v406
    %936 = vmatpush.msra.mxu0 %v403
    %937 = vmatpush.msra.mxu0 %v400
    %938 = vmatpush.msra.mxu0 %v397
    %939 = vmatpush.msra.mxu0 %v394
    %940 = vmatpush.msra.mxu0 %v391
    %941 = vmatpush.msra.mxu0 %v388
    %942 = vmatpush.msra.mxu0 %v385
    %943 = vmatpush.msra.mxu0 %v382
    %944 = vmatmul.f32.gmra.mxu0 %v881
    %v945 = vpop.f32.mrf.mxu0
    %v946 = vadd.f32 %v432, %v945
    %947 = vdwg.mxu0
    %v948 = vadd.f32 %v885, %v906
    %v949 = vxor.u32 %v948, 2147483648
    %v950 = vmul.f32 %v949, 1.442695
    %v951 = vpow.pop %v950
    %v952 = vadd.f32 %v951, 1.0
    %v953 = vrcp.pop %v952
    %v954 = vmul.f32 %v952, %v953
    %v955 = vsub.f32 1.0, %v954
    %v956 = vmul.f32 %v953, %v955
    %v957 = vadd.f32 %v953, %v956
    %vm958 = vweird.f32 %v952
    %vm959 = vweird.f32 %v953
    %vm960 = vmor %vm958, %vm959
    %v961 = vsel %vm960, %v953, %v957
    %v962 = vand.u32 2147483647, %v952
    %vm963 = vcmp.eq.f32.partialorder %v962, 8.507059e+37
    %v964 = vand.u32 %v952, 2147483648
    %v965 = vor.u32 1.1754944e-38, %v964
    %v966 = vsel %vm963, %v965, %v961
    %v967 = vmul.f32 1.0, %v966
    %v968 = vadd.f32 %v886, %v926
    %v969 = vxor.u32 %v968, 2147483648
    %v970 = vmul.f32 %v969, 1.442695
    %v971 = vpow.pop %v970
    %v972 = vadd.f32 %v971, 1.0
    %v973 = vrcp.pop %v972
    %v974 = vmul.f32 %v972, %v973
    %v975 = vsub.f32 1.0, %v974
    %v976 = vmul.f32 %v973, %v975
    %v977 = vadd.f32 %v973, %v976
    %vm978 = vweird.f32 %v972
    %vm979 = vweird.f32 %v973
    %vm980 = vmor %vm978, %vm979
    %v981 = vsel %vm980, %v973, %v977
    %v982 = vand.u32 2147483647, %v972
    %vm983 = vcmp.eq.f32.partialorder %v982, 8.507059e+37
    %v984 = vand.u32 %v972, 2147483648
    %v985 = vor.u32 1.1754944e-38, %v984
    %v986 = vsel %vm983, %v985, %v981
    %v987 = vmul.f32 1.0, %v986
    %v988 = vmul.f32 %v967, %v946
    %v989 = vadd.f32 %v887, %v988
    %v990 = vtanh.pop %v989
    %v991 = vsub.f32 1.0, %v987
    %v992 = vmul.f32 %v991, %v990
    %v993 = vmul.f32 %v987, %v881
    %v994 = vadd.f32 %v992, %v993
    %s995 = smul.u32 5, 3
    %s996 = smul.addr %s995, 8
    %s997 = scalar_lea.vmem [#allocation3], %s996
    %v998 = vld [vmem:[%s997] sm:$0xff]
    %v999 = vld [vmem:[%s997 + $0x8] sm:$0xff]
    %v1000 = vld [vmem:[%s997 + $0x10] sm:$0xff]
    %1001 = vmatpush.msra.mxu0 %v425
    %1002 = vmatpush.msra.mxu0 %v422
    %1003 = vmatpush.msra.mxu0 %v419
    %1004 = vmatpush.msra.mxu0 %v416
    %1005 = vmatpush.msra.mxu0 %v413
    %1006 = vmatpush.msra.mxu0 %v410
    %1007 = vmatpush.msra.mxu0 %v407
    %1008 = vmatpush.msra.mxu0 %v404
    %1009 = vmatpush.msra.mxu0 %v401
    %1010 = vmatpush.msra.mxu0 %v398
    %1011 = vmatpush.msra.mxu0 %v395
    %1012 = vmatpush.msra.mxu0 %v392
    %1013 = vmatpush.msra.mxu0 %v389
    %1014 = vmatpush.msra.mxu0 %v386
    %1015 = vmatpush.msra.mxu0 %v383
    %1016 = vmatpush.msra.mxu0 %v380
    %1017 = vmatmul.f32.gmra.mxu0 %v994
    %v1018 = vpop.f32.mrf.mxu0
    %v1019 = vadd.f32 %v430, %v1018
    %1020 = vdwg.mxu0
    %1021 = vmatpush.msra.mxu0 %v426
    %1022 = vmatpush.msra.mxu0 %v423
    %1023 = vmatpush.msra.mxu0 %v420
    %1024 = vmatpush.msra.mxu0 %v417
    %1025 = vmatpush.msra.mxu0 %v414
    %1026 = vmatpush.msra.mxu0 %v411
    %1027 = vmatpush.msra.mxu0 %v408
    %1028 = vmatpush.msra.mxu0 %v405
    %1029 = vmatpush.msra.mxu0 %v402
    %1030 = vmatpush.msra.mxu0 %v399
    %1031 = vmatpush.msra.mxu0 %v396
    %1032 = vmatpush.msra.mxu0 %v393
    %1033 = vmatpush.msra.mxu0 %v390
    %1034 = vmatpush.msra.mxu0 %v387
    %1035 = vmatpush.msra.mxu0 %v384
    %1036 = vmatpush.msra.mxu0 %v381
    %1037 = vmatmul.f32.gmra.mxu0 %v994
    %v1038 = vpop.f32.mrf.mxu0
    %v1039 = vadd.f32 %v431, %v1038
    %1040 = vdwg.mxu0
    %1041 = vmatpush.msra.mxu0 %v427
    %1042 = vmatpush.msra.mxu0 %v424
    %1043 = vmatpush.msra.mxu0 %v421
    %1044 = vmatpush.msra.mxu0 %v418
    %1045 = vmatpush.msra.mxu0 %v415
    %1046 = vmatpush.msra.mxu0 %v412
    %1047 = vmatpush.msra.mxu0 %v409
    %1048 = vmatpush.msra.mxu0 %v406
    %1049 = vmatpush.msra.mxu0 %v403
    %1050 = vmatpush.msra.mxu0 %v400
    %1051 = vmatpush.msra.mxu0 %v397
    %1052 = vmatpush.msra.mxu0 %v394
    %1053 = vmatpush.msra.mxu0 %v391
    %1054 = vmatpush.msra.mxu0 %v388
    %1055 = vmatpush.msra.mxu0 %v385
    %1056 = vmatpush.msra.mxu0 %v382
    %1057 = vmatmul.f32.gmra.mxu0 %v994
    %v1058 = vpop.f32.mrf.mxu0
    %v1059 = vadd.f32 %v432, %v1058
    %1060 = vdwg.mxu0
    %v1061 = vadd.f32 %v998, %v1019
    %v1062 = vxor.u32 %v1061, 2147483648
    %v1063 = vmul.f32 %v1062, 1.442695
    %v1064 = vpow.pop %v1063
    %v1065 = vadd.f32 %v1064, 1.0
    %v1066 = vrcp.pop %v1065
    %v1067 = vmul.f32 %v1065, %v1066
    %v1068 = vsub.f32 1.0, %v1067
    %v1069 = vmul.f32 %v1066, %v1068
    %v1070 = vadd.f32 %v1066, %v1069
    %vm1071 = vweird.f32 %v1065
    %vm1072 = vweird.f32 %v1066
    %vm1073 = vmor %vm1071, %vm1072
    %v1074 = vsel %vm1073, %v1066, %v1070
    %v1075 = vand.u32 2147483647, %v1065
    %vm1076 = vcmp.eq.f32.partialorder %v1075, 8.507059e+37
    %v1077 = vand.u32 %v1065, 2147483648
    %v1078 = vor.u32 1.1754944e-38, %v1077
    %v1079 = vsel %vm1076, %v1078, %v1074
    %v1080 = vmul.f32 1.0, %v1079
    %v1081 = vadd.f32 %v999, %v1039
    %v1082 = vxor.u32 %v1081, 2147483648
    %v1083 = vmul.f32 %v1082, 1.442695
    %v1084 = vpow.pop %v1083
    %v1085 = vadd.f32 %v1084, 1.0
    %v1086 = vrcp.pop %v1085
    %v1087 = vmul.f32 %v1085, %v1086
    %v1088 = vsub.f32 1.0, %v1087
    %v1089 = vmul.f32 %v1086, %v1088
    %v1090 = vadd.f32 %v1086, %v1089
    %vm1091 = vweird.f32 %v1085
    %vm1092 = vweird.f32 %v1086
    %vm1093 = vmor %vm1091, %vm1092
    %v1094 = vsel %vm1093, %v1086, %v1090
    %v1095 = vand.u32 2147483647, %v1085
    %vm1096 = vcmp.eq.f32.partialorder %v1095, 8.507059e+37
    %v1097 = vand.u32 %v1085, 2147483648
    %v1098 = vor.u32 1.1754944e-38, %v1097
    %v1099 = vsel %vm1096, %v1098, %v1094
    %v1100 = vmul.f32 1.0, %v1099
    %v1101 = vmul.f32 %v1080, %v1059
    %v1102 = vadd.f32 %v1000, %v1101
    %v1103 = vtanh.pop %v1102
    %v1104 = vsub.f32 1.0, %v1100
    %v1105 = vmul.f32 %v1104, %v1103
    %v1106 = vmul.f32 %v1100, %v994
    %v1107 = vadd.f32 %v1105, %v1106
    %s1108 = smul.u32 6, 3
    %s1109 = smul.addr %s1108, 8
    %s1110 = scalar_lea.vmem [#allocation3], %s1109
    %v1111 = vld [vmem:[%s1110] sm:$0xff]
    %v1112 = vld [vmem:[%s1110 + $0x8] sm:$0xff]
    %v1113 = vld [vmem:[%s1110 + $0x10] sm:$0xff]
    %1114 = vmatpush.msra.mxu0 %v425
    %1115 = vmatpush.msra.mxu0 %v422
    %1116 = vmatpush.msra.mxu0 %v419
    %1117 = vmatpush.msra.mxu0 %v416
    %1118 = vmatpush.msra.mxu0 %v413
    %1119 = vmatpush.msra.mxu0 %v410
    %1120 = vmatpush.msra.mxu0 %v407
    %1121 = vmatpush.msra.mxu0 %v404
    %1122 = vmatpush.msra.mxu0 %v401
    %1123 = vmatpush.msra.mxu0 %v398
    %1124 = vmatpush.msra.mxu0 %v395
    %1125 = vmatpush.msra.mxu0 %v392
    %1126 = vmatpush.msra.mxu0 %v389
    %1127 = vmatpush.msra.mxu0 %v386
    %1128 = vmatpush.msra.mxu0 %v383
    %1129 = vmatpush.msra.mxu0 %v380
    %1130 = vmatmul.f32.gmra.mxu0 %v1107
    %v1131 = vpop.f32.mrf.mxu0
    %v1132 = vadd.f32 %v430, %v1131
    %1133 = vdwg.mxu0
    %1134 = vmatpush.msra.mxu0 %v426
    %1135 = vmatpush.msra.mxu0 %v423
    %1136 = vmatpush.msra.mxu0 %v420
    %1137 = vmatpush.msra.mxu0 %v417
    %1138 = vmatpush.msra.mxu0 %v414
    %1139 = vmatpush.msra.mxu0 %v411
    %1140 = vmatpush.msra.mxu0 %v408
    %1141 = vmatpush.msra.mxu0 %v405
    %1142 = vmatpush.msra.mxu0 %v402
    %1143 = vmatpush.msra.mxu0 %v399
    %1144 = vmatpush.msra.mxu0 %v396
    %1145 = vmatpush.msra.mxu0 %v393
    %1146 = vmatpush.msra.mxu0 %v390
    %1147 = vmatpush.msra.mxu0 %v387
    %1148 = vmatpush.msra.mxu0 %v384
    %1149 = vmatpush.msra.mxu0 %v381
    %1150 = vmatmul.f32.gmra.mxu0 %v1107
    %v1151 = vpop.f32.mrf.mxu0
    %v1152 = vadd.f32 %v431, %v1151
    %1153 = vdwg.mxu0
    %1154 = vmatpush.msra.mxu0 %v427
    %1155 = vmatpush.msra.mxu0 %v424
    %1156 = vmatpush.msra.mxu0 %v421
    %1157 = vmatpush.msra.mxu0 %v418
    %1158 = vmatpush.msra.mxu0 %v415
    %1159 = vmatpush.msra.mxu0 %v412
    %1160 = vmatpush.msra.mxu0 %v409
    %1161 = vmatpush.msra.mxu0 %v406
    %1162 = vmatpush.msra.mxu0 %v403
    %1163 = vmatpush.msra.mxu0 %v400
    %1164 = vmatpush.msra.mxu0 %v397
    %1165 = vmatpush.msra.mxu0 %v394
    %1166 = vmatpush.msra.mxu0 %v391
    %1167 = vmatpush.msra.mxu0 %v388
    %1168 = vmatpush.msra.mxu0 %v385
    %1169 = vmatpush.msra.mxu0 %v382
    %1170 = vmatmul.f32.gmra.mxu0 %v1107
    %v1171 = vpop.f32.mrf.mxu0
    %v1172 = vadd.f32 %v432, %v1171
    %1173 = vdwg.mxu0
    %v1174 = vadd.f32 %v1111, %v1132
    %v1175 = vxor.u32 %v1174, 2147483648
    %v1176 = vmul.f32 %v1175, 1.442695
    %v1177 = vpow.pop %v1176
    %v1178 = vadd.f32 %v1177, 1.0
    %v1179 = vrcp.pop %v1178
    %v1180 = vmul.f32 %v1178, %v1179
    %v1181 = vsub.f32 1.0, %v1180
    %v1182 = vmul.f32 %v1179, %v1181
    %v1183 = vadd.f32 %v1179, %v1182
    %vm1184 = vweird.f32 %v1178
    %vm1185 = vweird.f32 %v1179
    %vm1186 = vmor %vm1184, %vm1185
    %v1187 = vsel %vm1186, %v1179, %v1183
    %v1188 = vand.u32 2147483647, %v1178
    %vm1189 = vcmp.eq.f32.partialorder %v1188, 8.507059e+37
    %v1190 = vand.u32 %v1178, 2147483648
    %v1191 = vor.u32 1.1754944e-38, %v1190
    %v1192 = vsel %vm1189, %v1191, %v1187
    %v1193 = vmul.f32 1.0, %v1192
    %v1194 = vadd.f32 %v1112, %v1152
    %v1195 = vxor.u32 %v1194, 2147483648
    %v1196 = vmul.f32 %v1195, 1.442695
    %v1197 = vpow.pop %v1196
    %v1198 = vadd.f32 %v1197, 1.0
    %v1199 = vrcp.pop %v1198
    %v1200 = vmul.f32 %v1198, %v1199
    %v1201 = vsub.f32 1.0, %v1200
    %v1202 = vmul.f32 %v1199, %v1201
    %v1203 = vadd.f32 %v1199, %v1202
    %vm1204 = vweird.f32 %v1198
    %vm1205 = vweird.f32 %v1199
    %vm1206 = vmor %vm1204, %vm1205
    %v1207 = vsel %vm1206, %v1199, %v1203
    %v1208 = vand.u32 2147483647, %v1198
    %vm1209 = vcmp.eq.f32.partialorder %v1208, 8.507059e+37
    %v1210 = vand.u32 %v1198, 2147483648
    %v1211 = vor.u32 1.1754944e-38, %v1210
    %v1212 = vsel %vm1209, %v1211, %v1207
    %v1213 = vmul.f32 1.0, %v1212
    %v1214 = vmul.f32 %v1193, %v1172
    %v1215 = vadd.f32 %v1113, %v1214
    %v1216 = vtanh.pop %v1215
    %v1217 = vsub.f32 1.0, %v1213
    %v1218 = vmul.f32 %v1217, %v1216
    %v1219 = vmul.f32 %v1213, %v1107
    %v1220 = vadd.f32 %v1218, %v1219
    %s1221 = smul.u32 7, 3
    %s1222 = smul.addr %s1221, 8
    %s1223 = scalar_lea.vmem [#allocation3], %s1222
    %v1224 = vld [vmem:[%s1223] sm:$0xff]
    %v1225 = vld [vmem:[%s1223 + $0x8] sm:$0xff]
    %v1226 = vld [vmem:[%s1223 + $0x10] sm:$0xff]
    %1227 = vmatpush.msra.mxu0 %v425
    %1228 = vmatpush.msra.mxu0 %v422
    %1229 = vmatpush.msra.mxu0 %v419
    %1230 = vmatpush.msra.mxu0 %v416
    %1231 = vmatpush.msra.mxu0 %v413
    %1232 = vmatpush.msra.mxu0 %v410
    %1233 = vmatpush.msra.mxu0 %v407
    %1234 = vmatpush.msra.mxu0 %v404
    %1235 = vmatpush.msra.mxu0 %v401
    %1236 = vmatpush.msra.mxu0 %v398
    %1237 = vmatpush.msra.mxu0 %v395
    %1238 = vmatpush.msra.mxu0 %v392
    %1239 = vmatpush.msra.mxu0 %v389
    %1240 = vmatpush.msra.mxu0 %v386
    %1241 = vmatpush.msra.mxu0 %v383
    %1242 = vmatpush.msra.mxu0 %v380
    %1243 = vmatmul.f32.gmra.mxu0 %v1220
    %v1244 = vpop.f32.mrf.mxu0
    %v1245 = vadd.f32 %v430, %v1244
    %1246 = vdwg.mxu0
    %1247 = vmatpush.msra.mxu0 %v426
    %1248 = vmatpush.msra.mxu0 %v423
    %1249 = vmatpush.msra.mxu0 %v420
    %1250 = vmatpush.msra.mxu0 %v417
    %1251 = vmatpush.msra.mxu0 %v414
    %1252 = vmatpush.msra.mxu0 %v411
    %1253 = vmatpush.msra.mxu0 %v408
    %1254 = vmatpush.msra.mxu0 %v405
    %1255 = vmatpush.msra.mxu0 %v402
    %1256 = vmatpush.msra.mxu0 %v399
    %1257 = vmatpush.msra.mxu0 %v396
    %1258 = vmatpush.msra.mxu0 %v393
    %1259 = vmatpush.msra.mxu0 %v390
    %1260 = vmatpush.msra.mxu0 %v387
    %1261 = vmatpush.msra.mxu0 %v384
    %1262 = vmatpush.msra.mxu0 %v381
    %1263 = vmatmul.f32.gmra.mxu0 %v1220
    %v1264 = vpop.f32.mrf.mxu0
    %v1265 = vadd.f32 %v431, %v1264
    %1266 = vdwg.mxu0
    %1267 = vmatpush.msra.mxu0 %v427
    %1268 = vmatpush.msra.mxu0 %v424
    %1269 = vmatpush.msra.mxu0 %v421
    %1270 = vmatpush.msra.mxu0 %v418
    %1271 = vmatpush.msra.mxu0 %v415
    %1272 = vmatpush.msra.mxu0 %v412
    %1273 = vmatpush.msra.mxu0 %v409
    %1274 = vmatpush.msra.mxu0 %v406
    %1275 = vmatpush.msra.mxu0 %v403
    %1276 = vmatpush.msra.mxu0 %v400
    %1277 = vmatpush.msra.mxu0 %v397
    %1278 = vmatpush.msra.mxu0 %v394
    %1279 = vmatpush.msra.mxu0 %v391
    %1280 = vmatpush.msra.mxu0 %v388
    %1281 = vmatpush.msra.mxu0 %v385
    %1282 = vmatpush.msra.mxu0 %v382
    %1283 = vmatmul.f32.gmra.mxu0 %v1220
    %v1284 = vpop.f32.mrf.mxu0
    %v1285 = vadd.f32 %v432, %v1284
    %1286 = vdwg.mxu0
    %v1287 = vadd.f32 %v1224, %v1245
    %v1288 = vxor.u32 %v1287, 2147483648
    %v1289 = vmul.f32 %v1288, 1.442695
    %v1290 = vpow.pop %v1289
    %v1291 = vadd.f32 %v1290, 1.0
    %v1292 = vrcp.pop %v1291
    %v1293 = vmul.f32 %v1291, %v1292
    %v1294 = vsub.f32 1.0, %v1293
    %v1295 = vmul.f32 %v1292, %v1294
    %v1296 = vadd.f32 %v1292, %v1295
    %vm1297 = vweird.f32 %v1291
    %vm1298 = vweird.f32 %v1292
    %vm1299 = vmor %vm1297, %vm1298
    %v1300 = vsel %vm1299, %v1292, %v1296
    %v1301 = vand.u32 2147483647, %v1291
    %vm1302 = vcmp.eq.f32.partialorder %v1301, 8.507059e+37
    %v1303 = vand.u32 %v1291, 2147483648
    %v1304 = vor.u32 1.1754944e-38, %v1303
    %v1305 = vsel %vm1302, %v1304, %v1300
    %v1306 = vmul.f32 1.0, %v1305
    %v1307 = vadd.f32 %v1225, %v1265
    %v1308 = vxor.u32 %v1307, 2147483648
    %v1309 = vmul.f32 %v1308, 1.442695
    %v1310 = vpow.pop %v1309
    %v1311 = vadd.f32 %v1310, 1.0
    %v1312 = vrcp.pop %v1311
    %v1313 = vmul.f32 %v1311, %v1312
    %v1314 = vsub.f32 1.0, %v1313
    %v1315 = vmul.f32 %v1312, %v1314
    %v1316 = vadd.f32 %v1312, %v1315
    %vm1317 = vweird.f32 %v1311
    %vm1318 = vweird.f32 %v1312
    %vm1319 = vmor %vm1317, %vm1318
    %v1320 = vsel %vm1319, %v1312, %v1316
    %v1321 = vand.u32 2147483647, %v1311
    %vm1322 = vcmp.eq.f32.partialorder %v1321, 8.507059e+37
    %v1323 = vand.u32 %v1311, 2147483648
    %v1324 = vor.u32 1.1754944e-38, %v1323
    %v1325 = vsel %vm1322, %v1324, %v1320
    %v1326 = vmul.f32 1.0, %v1325
    %v1327 = vmul.f32 %v1306, %v1285
    %v1328 = vadd.f32 %v1226, %v1327
    %v1329 = vtanh.pop %v1328
    %v1330 = vsub.f32 1.0, %v1326
    %v1331 = vmul.f32 %v1330, %v1329
    %v1332 = vmul.f32 %v1326, %v1220
    %v1333 = vadd.f32 %v1331, %v1332
    %1334 = vst [vmem:[#allocation14] sm:$0xff] %v1333
    // Predicated region
    $region38: #{tpu_custom_call.1} parent=1 // pred_check
      _
    $region39: #{tpu_custom_call.1} parent=1 // pred_check_branch
      %1336 = sbr.rel (0) target = $region41
    $region40: #{tpu_custom_call.1} parent=1 // pred_region
      %1338 = vsyncadd [#allocation8], 0
      %s1340 = sshll.u32 [#allocation14], 4
      %s1341 = int_to_ptr.vmem [resolvable:$true] %s1340
      %s1342 = sshll.u32 %s6, 4
      %s1343 = int_to_ptr.hbm [resolvable:$true] %s1342
      %1345 = dma.vmem_to_hbm [thread:$0]  %s1341, 128, %s1343, [#allocation8]
    $region41: #{tpu_custom_call.1} parent=1 // pred_fallthru
      _
    // Predicated region
    $region42: #{tpu_custom_call.1} parent=1 // pred_check
      _
    $region43: #{tpu_custom_call.1} parent=1 // pred_check_branch
      %1347 = sbr.rel (0) target = $region45
    $region44: #{tpu_custom_call.1} parent=1 // pred_region
      %1349 = dma.done [#allocation8], 128
    $region45: #{tpu_custom_call.1} parent=1 // pred_fallthru
      _
    %1350 = vsyncpa [#allocation7], 1
    %1351 = vsyncpa [#allocation10], 1
    %1352 = vsyncpa [#allocation13], 1
    %1353 = vsyncpa [#allocation8], 1

</llo_original>
